<compile_context>
chip_gen: v7x
topology: tpu7x:2x2x1
jax: 0.10.0
libtpu: 0.0.40
codegen_flags: <defaults>
</compile_context>

<pallas_src>
import jax
import jax.numpy as jnp
import numpy as np
from jax.experimental import pallas as pl
from jax.experimental.pallas import tpu as pltpu

EPS = 1e-5


def _make_basic_block_kernel(inv_m):
    """inv_m = 1/(N*H*W), captured statically."""

    def kernel(x_ref, s_ref, band1_ref, band2_ref, p_ref,
               g1_ref, b1_ref, g2_ref, b2_ref, out_ref):
        NH, WC = x_ref.shape

        x_bf = x_ref[...]                          # (NH, WC) bf16, lane-dense
        resid = x_bf.astype(jnp.float32)           # residual stays f32
        p = p_ref[...]                             # (WC, WC) f32 0/1 channel projector

        def conv3x3(act_bf, band_ref):
            # sum_kh  (S_kh @ act) @ B_kh  -- pure MXU, f32 accumulation.
            acc = jnp.zeros((NH, WC), jnp.float32)
            for kh in range(3):                    # static unroll (3 taps)
                shifted = jnp.dot(s_ref[kh], act_bf,
                                  preferred_element_type=jnp.float32)
                acc = acc + jnp.dot(shifted.astype(jnp.bfloat16), band_ref[kh],
                                    preferred_element_type=jnp.float32)
            return acc

        def bn_train(y, gamma_wc, beta_wc):
            # Two-pass training-mode batch stats, fully lane-dense.
            # y @ P folds the W lane-replicas per channel on the MXU and
            # re-broadcasts them, so mean/var land directly in (1, WC) form.
            mean_wc = jnp.sum(jnp.dot(y, p, preferred_element_type=jnp.float32),
                              axis=0, keepdims=True) * inv_m
            d = y - mean_wc
            var_wc = jnp.sum(jnp.dot(d * d, p, preferred_element_type=jnp.float32),
                             axis=0, keepdims=True) * inv_m
            scale_wc = gamma_wc * jax.lax.rsqrt(var_wc + EPS)
            return d * scale_wc + beta_wc

        # conv1 -> bn1 -> relu
        h = conv3x3(x_bf, band1_ref)
        h = jnp.maximum(bn_train(h, g1_ref[...], b1_ref[...]), 0.0)

        # conv2 -> bn2
        h2 = conv3x3(h.astype(jnp.bfloat16), band2_ref)
        h2 = bn_train(h2, g2_ref[...], b2_ref[...])

        # residual add + relu, lane-dense store (bf16 at the boundary)
        out_ref[...] = jnp.maximum(h2 + resid, 0.0).astype(out_ref.dtype)

    return kernel


def basic_block_nhwc(x_nhwc, w1, g1, b1, w2, g2, b2):
    """x_nhwc: (N,H,W,C) f32; w*: (3,3,Cin,Cout); g*,b*: (C,). Returns NHWC f32."""
    N, H, W, C = x_nhwc.shape
    NH, WC = N * H, W * C

    # bf16 lane-dense input at the pallas_call boundary.
    x2d = x_nhwc.reshape(NH, WC).astype(jnp.bfloat16)

    # --- static 0/1 structure matrices (trace-time constants) -------------
    # kw selector: sel[kw, wi, wo] = 1 iff wi - wo == kw - 1  (zero W-padding
    # is implicit: out-of-range blocks simply do not appear in the band).
    sel = np.zeros((3, W, W), np.float32)
    for kw in range(3):
        for wi in range(W):
            wo = wi - (kw - 1)
            if 0 <= wo < W:
                sel[kw, wi, wo] = 1.0

    # Batch-aware H shift: (S_kh @ X)[n*H+h] = X[n*H + h + (kh-1)] or 0 (pad).
    hshift = np.zeros((3, NH, NH), np.float32)
    for kh in range(3):
        dh = kh - 1
        for n in range(N):
            for h in range(H):
                hs = h + dh
                if 0 <= hs < H:
                    hshift[kh, n * H + h, n * H + hs] = 1.0

    # Channel projector: folds the W lane-replicas per channel and rebroadcasts.
    proj = np.tile(np.eye(C, dtype=np.float32), (W, W))          # (WC, WC)

    def band_of(w):  # (3,3,Cin,Cout) -> (3, W*Cin, W*Cout) block-banded, bf16
        b5 = jnp.einsum('xio,kxcd->kicod', jnp.asarray(sel), w)
        return b5.reshape(3, WC, WC).astype(jnp.bfloat16)

    band1, band2 = band_of(w1), band_of(w2)
    s_bf = jnp.asarray(hshift, jnp.bfloat16)
    p_f32 = jnp.asarray(proj, jnp.float32)

    def tile_wc(v):  # (C,) -> (1, W*C) lane-dense per-channel vector (f32)
        return jnp.tile(v.reshape(1, C).astype(jnp.float32), (1, W))

    g1wc, b1wc, g2wc, b2wc = tile_wc(g1), tile_wc(b1), tile_wc(g2), tile_wc(b2)

    kernel = _make_basic_block_kernel(1.0 / float(N * H * W))

    def _full(a):
        zeros = (0,) * a.ndim
        return pl.BlockSpec(a.shape, lambda i, z=zeros: z)

    args = (x2d, s_bf, band1, band2, p_f32, g1wc, b1wc, g2wc, b2wc)

    out2d = pl.pallas_call(
        kernel,
        out_shape=jax.ShapeDtypeStruct((NH, WC), jnp.bfloat16),
        grid=(1,),
        in_specs=[_full(a) for a in args],
        out_specs=pl.BlockSpec((NH, WC), lambda i: (0, 0)),
        compiler_params=pltpu.CompilerParams(
            dimension_semantics=("arbitrary",)),
    )(*args)

    return out2d.reshape(N, H, W, C).astype(jnp.float32)


def basic_block_nchw(x_nchw, w1, g1, b1, w2, g2, b2):
    """PyTorch-facing NCHW interface.

    NOTE(perf): these two transposes are whole-tensor HBM passes; in a real
    model keep activations NHWC end-to-end and call basic_block_nhwc directly.
    """
    x_nhwc = jnp.transpose(x_nchw, (0, 2, 3, 1))
    out_nhwc = basic_block_nhwc(x_nhwc, w1, g1, b1, w2, g2, b2)
    return jnp.transpose(out_nhwc, (0, 3, 1, 2))


def _reference_nchw(x, w1, g1, b1, w2, g2, b2):
    """Pure-JAX f32 reference of the PyTorch forward (training-mode BN)."""
    def conv(x_, w_):  # w_: (3,3,Cin,Cout)
        w_oihw = jnp.transpose(w_, (3, 2, 0, 1))
        return jax.lax.conv_general_dilated(
            x_, w_oihw, (1, 1), ((1, 1), (1, 1)),
            dimension_numbers=('NCHW', 'OIHW', 'NCHW'))

    def bn(x_, g, b):
        mean = jnp.mean(x_, axis=(0, 2, 3), keepdims=True)
        var = jnp.mean((x_ - mean) ** 2, axis=(0, 2, 3), keepdims=True)
        return ((x_ - mean) * jax.lax.rsqrt(var + EPS)
                * g.reshape(1, -1, 1, 1) + b.reshape(1, -1, 1, 1))

    out = jax.nn.relu(bn(conv(x, w1), g1, b1))
    out = bn(conv(out, w2), g2, b2)
    return jax.nn.relu(out + x)


if __name__ == "__main__":
    key = jax.random.PRNGKey(0)
    N, C, H, W = 2, 8, 16, 16            # inplanes == planes, stride=1
    ks = jax.random.split(key, 7)

    x = jax.random.normal(ks[0], (N, C, H, W), jnp.float32)

    fan_in = C * 3 * 3
    bound = 1.0 / np.sqrt(fan_in)
    w1 = jax.random.uniform(ks[1], (3, 3, C, C), jnp.float32, -bound, bound)
    w2 = jax.random.uniform(ks[2], (3, 3, C, C), jnp.float32, -bound, bound)
    g1 = jax.random.uniform(ks[3], (C,), jnp.float32, 0.5, 1.5)
    b1 = jax.random.uniform(ks[4], (C,), jnp.float32, -0.5, 0.5)
    g2 = jax.random.uniform(ks[5], (C,), jnp.float32, 0.5, 1.5)
    b2 = jax.random.uniform(ks[6], (C,), jnp.float32, -0.5, 0.5)

    out = basic_block_nchw(x, w1, g1, b1, w2, g2, b2)
    jax.block_until_ready(out)

    ref = _reference_nchw(x, w1, g1, b1, w2, g2, b2)
    out_np, ref_np = np.asarray(out), np.asarray(ref)
    max_err = float(np.max(np.abs(out_np - ref_np)))
    # Tolerance covers bf16 MXU operands and the bf16 kernel I/O boundary;
    # all elementwise/BN math is f32 with two-pass (centred) statistics.
    assert np.allclose(out_np, ref_np, atol=6e-2, rtol=6e-2), \
        f"Pallas BasicBlock does not match reference (max abs err {max_err})"

    print("KERNEL_OK")
</pallas_src>

<mosaic_0001>
module attributes {stable_mosaic.version = 11 : i64} {
  func.func @kernel(%arg0: i32, %arg1: memref<32x128xbf16, #tpu.memory_space<vmem>>, %arg2: memref<3x32x32xbf16, #tpu.memory_space<vmem>>, %arg3: memref<3x128x128xbf16, #tpu.memory_space<vmem>>, %arg4: memref<3x128x128xbf16, #tpu.memory_space<vmem>>, %arg5: memref<128x128xf32, #tpu.memory_space<vmem>>, %arg6: memref<1x128xf32, #tpu.memory_space<vmem>>, %arg7: memref<1x128xf32, #tpu.memory_space<vmem>>, %arg8: memref<1x128xf32, #tpu.memory_space<vmem>>, %arg9: memref<1x128xf32, #tpu.memory_space<vmem>>, %arg10: memref<32x128xbf16, #tpu.memory_space<vmem>>) attributes {dimension_semantics = [#tpu.dimension_semantics<arbitrary>], iteration_bounds = array<i64: 1>, scalar_prefetch = 0 : i64, scratch_operands = 0 : i64, tpu.core_type = #tpu.core_type<tc>, window_params = [{pipeline_mode = #tpu.pipeline_mode<synchronous>, transform_indices = @transform_0, window_bounds = array<i64: 32, 128>}, {pipeline_mode = #tpu.pipeline_mode<synchronous>, transform_indices = @transform_1, window_bounds = array<i64: 3, 32, 32>}, {pipeline_mode = #tpu.pipeline_mode<synchronous>, transform_indices = @transform_2, window_bounds = array<i64: 3, 128, 128>}, {pipeline_mode = #tpu.pipeline_mode<synchronous>, transform_indices = @transform_3, window_bounds = array<i64: 3, 128, 128>}, {pipeline_mode = #tpu.pipeline_mode<synchronous>, transform_indices = @transform_4, window_bounds = array<i64: 128, 128>}, {pipeline_mode = #tpu.pipeline_mode<synchronous>, transform_indices = @transform_5, window_bounds = array<i64: 1, 128>}, {pipeline_mode = #tpu.pipeline_mode<synchronous>, transform_indices = @transform_6, window_bounds = array<i64: 1, 128>}, {pipeline_mode = #tpu.pipeline_mode<synchronous>, transform_indices = @transform_7, window_bounds = array<i64: 1, 128>}, {pipeline_mode = #tpu.pipeline_mode<synchronous>, transform_indices = @transform_8, window_bounds = array<i64: 1, 128>}, {pipeline_mode = #tpu.pipeline_mode<synchronous>, transform_indices = @transform_9, window_bounds = array<i64: 32, 128>}]} {
    %c0 = arith.constant 0 : index
    %c0_0 = arith.constant 0 : index
    %0 = vector.load %arg1[%c0, %c0_0] : memref<32x128xbf16, #tpu.memory_space<vmem>>, vector<32x128xbf16>
    %1 = arith.extf %0 : vector<32x128xbf16> to vector<32x128xf32>
    %c0_1 = arith.constant 0 : index
    %c0_2 = arith.constant 0 : index
    %2 = vector.load %arg5[%c0_1, %c0_2] : memref<128x128xf32, #tpu.memory_space<vmem>>, vector<128x128xf32>
    %cst = arith.constant 0.000000e+00 : f32
    %3 = vector.broadcast %cst : f32 to vector<32x128xf32>
    %c0_3 = arith.constant 0 : index
    %c0_4 = arith.constant 0 : index
    %c0_5 = arith.constant 0 : index
    %4 = vector.load %arg2[%c0_3, %c0_4, %c0_5] : memref<3x32x32xbf16, #tpu.memory_space<vmem>>, vector<1x32x32xbf16>
    %5 = vector.shape_cast %4 : vector<1x32x32xbf16> to vector<32x32xbf16>
    %cst_6 = arith.constant dense<0.000000e+00> : vector<32x128xf32>
    %6 = tpu.matmul %5, %0, %cst_6 {dimension_numbers = #tpu.dot_dimension_numbers<[1], [0], [0], [1], [0, 0, 1, 1], [], []>} : vector<32x32xbf16>, vector<32x128xbf16>, vector<32x128xf32> -> vector<32x128xf32>
    %7 = arith.truncf %6 : vector<32x128xf32> to vector<32x128xbf16>
    %c0_7 = arith.constant 0 : index
    %c0_8 = arith.constant 0 : index
    %c0_9 = arith.constant 0 : index
    %8 = vector.load %arg3[%c0_7, %c0_8, %c0_9] : memref<3x128x128xbf16, #tpu.memory_space<vmem>>, vector<1x128x128xbf16>
    %9 = vector.shape_cast %8 : vector<1x128x128xbf16> to vector<128x128xbf16>
    %cst_10 = arith.constant dense<0.000000e+00> : vector<32x128xf32>
    %10 = tpu.matmul %7, %9, %cst_10 {dimension_numbers = #tpu.dot_dimension_numbers<[1], [0], [0], [1], [0, 0, 1, 1], [], []>} : vector<32x128xbf16>, vector<128x128xbf16>, vector<32x128xf32> -> vector<32x128xf32>
    %11 = arith.addf %3, %10 : vector<32x128xf32>
    %c1 = arith.constant 1 : index
    %c0_11 = arith.constant 0 : index
    %c0_12 = arith.constant 0 : index
    %12 = vector.load %arg2[%c1, %c0_11, %c0_12] : memref<3x32x32xbf16, #tpu.memory_space<vmem>>, vector<1x32x32xbf16>
    %13 = vector.shape_cast %12 : vector<1x32x32xbf16> to vector<32x32xbf16>
    %cst_13 = arith.constant dense<0.000000e+00> : vector<32x128xf32>
    %14 = tpu.matmul %13, %0, %cst_13 {dimension_numbers = #tpu.dot_dimension_numbers<[1], [0], [0], [1], [0, 0, 1, 1], [], []>} : vector<32x32xbf16>, vector<32x128xbf16>, vector<32x128xf32> -> vector<32x128xf32>
    %15 = arith.truncf %14 : vector<32x128xf32> to vector<32x128xbf16>
    %c1_14 = arith.constant 1 : index
    %c0_15 = arith.constant 0 : index
    %c0_16 = arith.constant 0 : index
    %16 = vector.load %arg3[%c1_14, %c0_15, %c0_16] : memref<3x128x128xbf16, #tpu.memory_space<vmem>>, vector<1x128x128xbf16>
    %17 = vector.shape_cast %16 : vector<1x128x128xbf16> to vector<128x128xbf16>
    %cst_17 = arith.constant dense<0.000000e+00> : vector<32x128xf32>
    %18 = tpu.matmul %15, %17, %cst_17 {dimension_numbers = #tpu.dot_dimension_numbers<[1], [0], [0], [1], [0, 0, 1, 1], [], []>} : vector<32x128xbf16>, vector<128x128xbf16>, vector<32x128xf32> -> vector<32x128xf32>
    %19 = arith.addf %11, %18 : vector<32x128xf32>
    %c2 = arith.constant 2 : index
    %c0_18 = arith.constant 0 : index
    %c0_19 = arith.constant 0 : index
    %20 = vector.load %arg2[%c2, %c0_18, %c0_19] : memref<3x32x32xbf16, #tpu.memory_space<vmem>>, vector<1x32x32xbf16>
    %21 = vector.shape_cast %20 : vector<1x32x32xbf16> to vector<32x32xbf16>
    %cst_20 = arith.constant dense<0.000000e+00> : vector<32x128xf32>
    %22 = tpu.matmul %21, %0, %cst_20 {dimension_numbers = #tpu.dot_dimension_numbers<[1], [0], [0], [1], [0, 0, 1, 1], [], []>} : vector<32x32xbf16>, vector<32x128xbf16>, vector<32x128xf32> -> vector<32x128xf32>
    %23 = arith.truncf %22 : vector<32x128xf32> to vector<32x128xbf16>
    %c2_21 = arith.constant 2 : index
    %c0_22 = arith.constant 0 : index
    %c0_23 = arith.constant 0 : index
    %24 = vector.load %arg3[%c2_21, %c0_22, %c0_23] : memref<3x128x128xbf16, #tpu.memory_space<vmem>>, vector<1x128x128xbf16>
    %25 = vector.shape_cast %24 : vector<1x128x128xbf16> to vector<128x128xbf16>
    %cst_24 = arith.constant dense<0.000000e+00> : vector<32x128xf32>
    %26 = tpu.matmul %23, %25, %cst_24 {dimension_numbers = #tpu.dot_dimension_numbers<[1], [0], [0], [1], [0, 0, 1, 1], [], []>} : vector<32x128xbf16>, vector<128x128xbf16>, vector<32x128xf32> -> vector<32x128xf32>
    %27 = arith.addf %19, %26 : vector<32x128xf32>
    %c0_25 = arith.constant 0 : index
    %c0_26 = arith.constant 0 : index
    %28 = vector.load %arg6[%c0_25, %c0_26] : memref<1x128xf32, #tpu.memory_space<vmem>>, vector<1x128xf32>
    %c0_27 = arith.constant 0 : index
    %c0_28 = arith.constant 0 : index
    %29 = vector.load %arg7[%c0_27, %c0_28] : memref<1x128xf32, #tpu.memory_space<vmem>>, vector<1x128xf32>
    %cst_29 = arith.constant dense<0.000000e+00> : vector<32x128xf32>
    %30 = tpu.matmul %27, %2, %cst_29 {dimension_numbers = #tpu.dot_dimension_numbers<[1], [0], [0], [1], [0, 0, 1, 1], [], []>} : vector<32x128xf32>, vector<128x128xf32>, vector<32x128xf32> -> vector<32x128xf32>
    %cst_30 = arith.constant dense<0.000000e+00> : vector<128xf32>
    %31 = vector.multi_reduction <add>, %30, %cst_30 [0] : vector<32x128xf32> to vector<128xf32>
    %32 = vector.shape_cast %31 : vector<128xf32> to vector<1x128xf32>
    %cst_31 = arith.constant 0.001953125 : f32
    %33 = vector.broadcast %cst_31 : f32 to vector<1x128xf32>
    %34 = arith.mulf %32, %33 : vector<1x128xf32>
    %35 = vector.broadcast %34 : vector<1x128xf32> to vector<32x128xf32>
    %36 = arith.subf %27, %35 : vector<32x128xf32>
    %37 = arith.mulf %36, %36 : vector<32x128xf32>
    %cst_32 = arith.constant dense<0.000000e+00> : vector<32x128xf32>
    %38 = tpu.matmul %37, %2, %cst_32 {dimension_numbers = #tpu.dot_dimension_numbers<[1], [0], [0], [1], [0, 0, 1, 1], [], []>} : vector<32x128xf32>, vector<128x128xf32>, vector<32x128xf32> -> vector<32x128xf32>
    %cst_33 = arith.constant dense<0.000000e+00> : vector<128xf32>
    %39 = vector.multi_reduction <add>, %38, %cst_33 [0] : vector<32x128xf32> to vector<128xf32>
    %40 = vector.shape_cast %39 : vector<128xf32> to vector<1x128xf32>
    %cst_34 = arith.constant 0.001953125 : f32
    %41 = vector.broadcast %cst_34 : f32 to vector<1x128xf32>
    %42 = arith.mulf %40, %41 : vector<1x128xf32>
    %cst_35 = arith.constant 9.99999974E-6 : f32
    %43 = vector.broadcast %cst_35 : f32 to vector<1x128xf32>
    %44 = arith.addf %42, %43 : vector<1x128xf32>
    %45 = math.rsqrt %44 : vector<1x128xf32>
    %46 = arith.mulf %28, %45 : vector<1x128xf32>
    %47 = vector.broadcast %46 : vector<1x128xf32> to vector<32x128xf32>
    %48 = arith.mulf %36, %47 : vector<32x128xf32>
    %49 = vector.broadcast %29 : vector<1x128xf32> to vector<32x128xf32>
    %50 = arith.addf %48, %49 : vector<32x128xf32>
    %cst_36 = arith.constant 0.000000e+00 : f32
    %51 = vector.broadcast %cst_36 : f32 to vector<32x128xf32>
    %52 = arith.maximumf %50, %51 : vector<32x128xf32>
    %53 = arith.truncf %52 : vector<32x128xf32> to vector<32x128xbf16>
    %cst_37 = arith.constant 0.000000e+00 : f32
    %54 = vector.broadcast %cst_37 : f32 to vector<32x128xf32>
    %c0_38 = arith.constant 0 : index
    %c0_39 = arith.constant 0 : index
    %c0_40 = arith.constant 0 : index
    %55 = vector.load %arg2[%c0_38, %c0_39, %c0_40] : memref<3x32x32xbf16, #tpu.memory_space<vmem>>, vector<1x32x32xbf16>
    %56 = vector.shape_cast %55 : vector<1x32x32xbf16> to vector<32x32xbf16>
    %cst_41 = arith.constant dense<0.000000e+00> : vector<32x128xf32>
    %57 = tpu.matmul %56, %53, %cst_41 {dimension_numbers = #tpu.dot_dimension_numbers<[1], [0], [0], [1], [0, 0, 1, 1], [], []>} : vector<32x32xbf16>, vector<32x128xbf16>, vector<32x128xf32> -> vector<32x128xf32>
    %58 = arith.truncf %57 : vector<32x128xf32> to vector<32x128xbf16>
    %c0_42 = arith.constant 0 : index
    %c0_43 = arith.constant 0 : index
    %c0_44 = arith.constant 0 : index
    %59 = vector.load %arg4[%c0_42, %c0_43, %c0_44] : memref<3x128x128xbf16, #tpu.memory_space<vmem>>, vector<1x128x128xbf16>
    %60 = vector.shape_cast %59 : vector<1x128x128xbf16> to vector<128x128xbf16>
    %cst_45 = arith.constant dense<0.000000e+00> : vector<32x128xf32>
    %61 = tpu.matmul %58, %60, %cst_45 {dimension_numbers = #tpu.dot_dimension_numbers<[1], [0], [0], [1], [0, 0, 1, 1], [], []>} : vector<32x128xbf16>, vector<128x128xbf16>, vector<32x128xf32> -> vector<32x128xf32>
    %62 = arith.addf %54, %61 : vector<32x128xf32>
    %c1_46 = arith.constant 1 : index
    %c0_47 = arith.constant 0 : index
    %c0_48 = arith.constant 0 : index
    %63 = vector.load %arg2[%c1_46, %c0_47, %c0_48] : memref<3x32x32xbf16, #tpu.memory_space<vmem>>, vector<1x32x32xbf16>
    %64 = vector.shape_cast %63 : vector<1x32x32xbf16> to vector<32x32xbf16>
    %cst_49 = arith.constant dense<0.000000e+00> : vector<32x128xf32>
    %65 = tpu.matmul %64, %53, %cst_49 {dimension_numbers = #tpu.dot_dimension_numbers<[1], [0], [0], [1], [0, 0, 1, 1], [], []>} : vector<32x32xbf16>, vector<32x128xbf16>, vector<32x128xf32> -> vector<32x128xf32>
    %66 = arith.truncf %65 : vector<32x128xf32> to vector<32x128xbf16>
    %c1_50 = arith.constant 1 : index
    %c0_51 = arith.constant 0 : index
    %c0_52 = arith.constant 0 : index
    %67 = vector.load %arg4[%c1_50, %c0_51, %c0_52] : memref<3x128x128xbf16, #tpu.memory_space<vmem>>, vector<1x128x128xbf16>
    %68 = vector.shape_cast %67 : vector<1x128x128xbf16> to vector<128x128xbf16>
    %cst_53 = arith.constant dense<0.000000e+00> : vector<32x128xf32>
    %69 = tpu.matmul %66, %68, %cst_53 {dimension_numbers = #tpu.dot_dimension_numbers<[1], [0], [0], [1], [0, 0, 1, 1], [], []>} : vector<32x128xbf16>, vector<128x128xbf16>, vector<32x128xf32> -> vector<32x128xf32>
    %70 = arith.addf %62, %69 : vector<32x128xf32>
    %c2_54 = arith.constant 2 : index
    %c0_55 = arith.constant 0 : index
    %c0_56 = arith.constant 0 : index
    %71 = vector.load %arg2[%c2_54, %c0_55, %c0_56] : memref<3x32x32xbf16, #tpu.memory_space<vmem>>, vector<1x32x32xbf16>
    %72 = vector.shape_cast %71 : vector<1x32x32xbf16> to vector<32x32xbf16>
    %cst_57 = arith.constant dense<0.000000e+00> : vector<32x128xf32>
    %73 = tpu.matmul %72, %53, %cst_57 {dimension_numbers = #tpu.dot_dimension_numbers<[1], [0], [0], [1], [0, 0, 1, 1], [], []>} : vector<32x32xbf16>, vector<32x128xbf16>, vector<32x128xf32> -> vector<32x128xf32>
    %74 = arith.truncf %73 : vector<32x128xf32> to vector<32x128xbf16>
    %c2_58 = arith.constant 2 : index
    %c0_59 = arith.constant 0 : index
    %c0_60 = arith.constant 0 : index
    %75 = vector.load %arg4[%c2_58, %c0_59, %c0_60] : memref<3x128x128xbf16, #tpu.memory_space<vmem>>, vector<1x128x128xbf16>
    %76 = vector.shape_cast %75 : vector<1x128x128xbf16> to vector<128x128xbf16>
    %cst_61 = arith.constant dense<0.000000e+00> : vector<32x128xf32>
    %77 = tpu.matmul %74, %76, %cst_61 {dimension_numbers = #tpu.dot_dimension_numbers<[1], [0], [0], [1], [0, 0, 1, 1], [], []>} : vector<32x128xbf16>, vector<128x128xbf16>, vector<32x128xf32> -> vector<32x128xf32>
    %78 = arith.addf %70, %77 : vector<32x128xf32>
    %c0_62 = arith.constant 0 : index
    %c0_63 = arith.constant 0 : index
    %79 = vector.load %arg8[%c0_62, %c0_63] : memref<1x128xf32, #tpu.memory_space<vmem>>, vector<1x128xf32>
    %c0_64 = arith.constant 0 : index
    %c0_65 = arith.constant 0 : index
    %80 = vector.load %arg9[%c0_64, %c0_65] : memref<1x128xf32, #tpu.memory_space<vmem>>, vector<1x128xf32>
    %cst_66 = arith.constant dense<0.000000e+00> : vector<32x128xf32>
    %81 = tpu.matmul %78, %2, %cst_66 {dimension_numbers = #tpu.dot_dimension_numbers<[1], [0], [0], [1], [0, 0, 1, 1], [], []>} : vector<32x128xf32>, vector<128x128xf32>, vector<32x128xf32> -> vector<32x128xf32>
    %cst_67 = arith.constant dense<0.000000e+00> : vector<128xf32>
    %82 = vector.multi_reduction <add>, %81, %cst_67 [0] : vector<32x128xf32> to vector<128xf32>
    %83 = vector.shape_cast %82 : vector<128xf32> to vector<1x128xf32>
    %cst_68 = arith.constant 0.001953125 : f32
    %84 = vector.broadcast %cst_68 : f32 to vector<1x128xf32>
    %85 = arith.mulf %83, %84 : vector<1x128xf32>
    %86 = vector.broadcast %85 : vector<1x128xf32> to vector<32x128xf32>
    %87 = arith.subf %78, %86 : vector<32x128xf32>
    %88 = arith.mulf %87, %87 : vector<32x128xf32>
    %cst_69 = arith.constant dense<0.000000e+00> : vector<32x128xf32>
    %89 = tpu.matmul %88, %2, %cst_69 {dimension_numbers = #tpu.dot_dimension_numbers<[1], [0], [0], [1], [0, 0, 1, 1], [], []>} : vector<32x128xf32>, vector<128x128xf32>, vector<32x128xf32> -> vector<32x128xf32>
    %cst_70 = arith.constant dense<0.000000e+00> : vector<128xf32>
    %90 = vector.multi_reduction <add>, %89, %cst_70 [0] : vector<32x128xf32> to vector<128xf32>
    %91 = vector.shape_cast %90 : vector<128xf32> to vector<1x128xf32>
    %cst_71 = arith.constant 0.001953125 : f32
    %92 = vector.broadcast %cst_71 : f32 to vector<1x128xf32>
    %93 = arith.mulf %91, %92 : vector<1x128xf32>
    %cst_72 = arith.constant 9.99999974E-6 : f32
    %94 = vector.broadcast %cst_72 : f32 to vector<1x128xf32>
    %95 = arith.addf %93, %94 : vector<1x128xf32>
    %96 = math.rsqrt %95 : vector<1x128xf32>
    %97 = arith.mulf %79, %96 : vector<1x128xf32>
    %98 = vector.broadcast %97 : vector<1x128xf32> to vector<32x128xf32>
    %99 = arith.mulf %87, %98 : vector<32x128xf32>
    %100 = vector.broadcast %80 : vector<1x128xf32> to vector<32x128xf32>
    %101 = arith.addf %99, %100 : vector<32x128xf32>
    %102 = arith.addf %101, %1 : vector<32x128xf32>
    %cst_73 = arith.constant 0.000000e+00 : f32
    %103 = vector.broadcast %cst_73 : f32 to vector<32x128xf32>
    %104 = arith.maximumf %102, %103 : vector<32x128xf32>
    %105 = arith.truncf %104 : vector<32x128xf32> to vector<32x128xbf16>
    %c0_74 = arith.constant 0 : index
    %c0_75 = arith.constant 0 : index
    %106 = vector.load %arg10[%c0_74, %c0_75] : memref<32x128xbf16, #tpu.memory_space<vmem>>, vector<32x128xbf16>
    tpu.vector_store %arg10[%c0_74, %c0_75], %105 {strides = array<i32>} : memref<32x128xbf16, #tpu.memory_space<vmem>>, vector<32x128xbf16>,
    return
  }
  func.func @transform_0(%arg0: i32) -> (i32, i32) {
    %c0_i32 = arith.constant 0 : i32
    %c0_i32_0 = arith.constant 0 : i32
    %c0_i32_1 = arith.constant 0 : i32
    return %c0_i32, %c0_i32_0 : i32, i32
  }
  func.func @transform_1(%arg0: i32) -> (i32, i32, i32) {
    %c0_i32 = arith.constant 0 : i32
    %c0_i32_0 = arith.constant 0 : i32
    %c0_i32_1 = arith.constant 0 : i32
    %c0_i32_2 = arith.constant 0 : i32
    return %c0_i32, %c0_i32_0, %c0_i32_1 : i32, i32, i32
  }
  func.func @transform_2(%arg0: i32) -> (i32, i32, i32) {
    %c0_i32 = arith.constant 0 : i32
    %c0_i32_0 = arith.constant 0 : i32
    %c0_i32_1 = arith.constant 0 : i32
    %c0_i32_2 = arith.constant 0 : i32
    return %c0_i32, %c0_i32_0, %c0_i32_1 : i32, i32, i32
  }
  func.func @transform_3(%arg0: i32) -> (i32, i32, i32) {
    %c0_i32 = arith.constant 0 : i32
    %c0_i32_0 = arith.constant 0 : i32
    %c0_i32_1 = arith.constant 0 : i32
    %c0_i32_2 = arith.constant 0 : i32
    return %c0_i32, %c0_i32_0, %c0_i32_1 : i32, i32, i32
  }
  func.func @transform_4(%arg0: i32) -> (i32, i32) {
    %c0_i32 = arith.constant 0 : i32
    %c0_i32_0 = arith.constant 0 : i32
    %c0_i32_1 = arith.constant 0 : i32
    return %c0_i32, %c0_i32_0 : i32, i32
  }
  func.func @transform_5(%arg0: i32) -> (i32, i32) {
    %c0_i32 = arith.constant 0 : i32
    %c0_i32_0 = arith.constant 0 : i32
    %c0_i32_1 = arith.constant 0 : i32
    return %c0_i32, %c0_i32_0 : i32, i32
  }
  func.func @transform_6(%arg0: i32) -> (i32, i32) {
    %c0_i32 = arith.constant 0 : i32
    %c0_i32_0 = arith.constant 0 : i32
    %c0_i32_1 = arith.constant 0 : i32
    return %c0_i32, %c0_i32_0 : i32, i32
  }
  func.func @transform_7(%arg0: i32) -> (i32, i32) {
    %c0_i32 = arith.constant 0 : i32
    %c0_i32_0 = arith.constant 0 : i32
    %c0_i32_1 = arith.constant 0 : i32
    return %c0_i32, %c0_i32_0 : i32, i32
  }
  func.func @transform_8(%arg0: i32) -> (i32, i32) {
    %c0_i32 = arith.constant 0 : i32
    %c0_i32_0 = arith.constant 0 : i32
    %c0_i32_1 = arith.constant 0 : i32
    return %c0_i32, %c0_i32_0 : i32, i32
  }
  func.func @transform_9(%arg0: i32) -> (i32, i32) {
    %c0_i32 = arith.constant 0 : i32
    %c0_i32_0 = arith.constant 0 : i32
    %c0_i32_1 = arith.constant 0 : i32
    return %c0_i32, %c0_i32_0 : i32, i32
  }
}

</mosaic_0001>

<llo_original>
// kernel: tpu_custom_call.1
$region0: #{tpu_custom_call.1}
  #allocation0 [shape = 'u32[]', space=smem, size = 0x4, offset = 0x4, fixed_abs, tag = 'smem constant byte address 0x4 - core index']
  #allocation1 [shape = 'u32[144,128]{1,0:T(1,128)}', space=vmem, size = 0x12000, scoped, tag = 'internal scratch']
  %s0 = inlined_call_operand.hbm [shape: bf16[32,128], index: 0, kind: input, shape index: {}]
  %s1 = inlined_call_operand.hbm [shape: bf16[3,32,32], index: 1, kind: input, shape index: {}]
  %s2 = inlined_call_operand.hbm [shape: bf16[3,128,128], index: 2, kind: input, shape index: {}]
  %s3 = inlined_call_operand.hbm [shape: bf16[3,128,128], index: 3, kind: input, shape index: {}]
  %s4 = inlined_call_operand.hbm [shape: f32[128,128], index: 4, kind: input, shape index: {}]
  %s5 = inlined_call_operand.vmem [shape: f32[1,128], index: 5, kind: input, shape index: {}]
  %s6 = inlined_call_operand.vmem [shape: f32[1,128], index: 6, kind: input, shape index: {}]
  %s7 = inlined_call_operand.vmem [shape: f32[1,128], index: 7, kind: input, shape index: {}]
  %s8 = inlined_call_operand.vmem [shape: f32[1,128], index: 8, kind: input, shape index: {}]
  %s9 = inlined_call_operand.hbm [shape: bf16[32,128], index: 9, kind: output, shape index: {}]
  %s10 = sld [smem:[#allocation0]]
  $region66: #{tpu_custom_call.1} parent=0
    _
  %s12 = ssub.s32 1, %s10
  %s13 = scalar_select 0, %s12, %s10
  $region1: #{tpu_custom_call.1} parent=0
    #allocation2 [shape = 'u8[8192]{0}', space=vmem, size = 0x2000, scoped, tag = 'input window, operand 0, single buffered']
    #allocation3 [shape = 's32[1]{0}', space=sflag, size = 0x4, scoped, tag = 'scoped memory for tpu_custom_call.1']
    #allocation4 [shape = 's32[1]{0}', space=sflag, size = 0x4, scoped, tag = 'scoped memory for tpu_custom_call.1']
    #allocation5 [shape = 'u8[24576]{0}', space=vmem, size = 0x6000, scoped, tag = 'input window, operand 1, single buffered']
    #allocation6 [shape = 's32[1]{0}', space=sflag, size = 0x4, scoped, tag = 'scoped memory for tpu_custom_call.1']
    #allocation7 [shape = 'u8[98304]{0}', space=vmem, size = 0x18000, scoped, tag = 'input window, operand 2, single buffered']
    #allocation8 [shape = 'u8[98304]{0}', space=vmem, size = 0x18000, scoped, tag = 'input window, operand 3, single buffered']
    #allocation9 [shape = 's32[1]{0}', space=sflag, size = 0x4, scoped, tag = 'scoped memory for tpu_custom_call.1']
    #allocation10 [shape = 'u8[65536]{0}', space=vmem, size = 0x10000, scoped, tag = 'input window, operand 4, single buffered']
    #allocation11 [shape = 'u8[8192]{0}', space=vmem, size = 0x2000, scoped, tag = 'output window, operand 0, single buffered']
    %14 = vsyncpa [#allocation3], 0
    %15 = vsyncpa [#allocation6], 0
    %16 = vsyncpa [#allocation9], 0
    %17 = vsyncpa [#allocation4], 0
    // Predicated region
    $region2: #{tpu_custom_call.1} parent=1 // pred_check
      _
    $region3: #{tpu_custom_call.1} parent=1 // pred_check_branch
      %19 = sbr.rel (0) target = $region5
    $region4: #{tpu_custom_call.1} parent=1 // pred_region
      %s21 = ssub.s32 256, 256
      %22 = vsyncadd [#allocation3], %s21
      %s23 = sshll.u32 [#allocation2], 4
      %s24 = int_to_ptr.vmem [resolvable:$true] %s23
      %29 = dma.hbm_to_vmem [thread:$0]  %s0, 256, %s24, [#allocation3], 64, 64, 4
    $region5: #{tpu_custom_call.1} parent=1 // pred_fallthru
      _
    // Predicated region
    $region6: #{tpu_custom_call.1} parent=1 // pred_check
      _
    $region7: #{tpu_custom_call.1} parent=1 // pred_check_branch
      %31 = sbr.rel (0) target = $region9
    $region8: #{tpu_custom_call.1} parent=1 // pred_region
      %s33 = ssub.s32 768, 768
      %34 = vsyncadd [#allocation6], %s33
      %s35 = sshll.u32 [#allocation5], 4
      %s36 = int_to_ptr.vmem [resolvable:$true] %s35
      %41 = dma.hbm_to_vmem [thread:$0]  %s1, 768, %s36, [#allocation6], 64, 64, 4
    $region9: #{tpu_custom_call.1} parent=1 // pred_fallthru
      _
    // Predicated region
    $region10: #{tpu_custom_call.1} parent=1 // pred_check
      _
    $region11: #{tpu_custom_call.1} parent=1 // pred_check_branch
      %43 = sbr.rel (0) target = $region13
    $region12: #{tpu_custom_call.1} parent=1 // pred_region
      %s45 = ssub.s32 3072, 3072
      %46 = vsyncadd [#allocation6], %s45
      %s47 = sshll.u32 [#allocation7], 4
      %s48 = int_to_ptr.vmem [resolvable:$true] %s47
      %53 = dma.hbm_to_vmem [thread:$0]  %s2, 3072, %s48, [#allocation6], 64, 64, 4
    $region13: #{tpu_custom_call.1} parent=1 // pred_fallthru
      _
    // Predicated region
    $region14: #{tpu_custom_call.1} parent=1 // pred_check
      _
    $region15: #{tpu_custom_call.1} parent=1 // pred_check_branch
      %55 = sbr.rel (0) target = $region17
    $region16: #{tpu_custom_call.1} parent=1 // pred_region
      %s57 = ssub.s32 3072, 3072
      %58 = vsyncadd [#allocation9], %s57
      %s59 = sshll.u32 [#allocation8], 4
      %s60 = int_to_ptr.vmem [resolvable:$true] %s59
      %65 = dma.hbm_to_vmem [thread:$0]  %s3, 3072, %s60, [#allocation9], 64, 64, 4
    $region17: #{tpu_custom_call.1} parent=1 // pred_fallthru
      _
    // Predicated region
    $region18: #{tpu_custom_call.1} parent=1 // pred_check
      _
    $region19: #{tpu_custom_call.1} parent=1 // pred_check_branch
      %67 = sbr.rel (0) target = $region21
    $region20: #{tpu_custom_call.1} parent=1 // pred_region
      %s69 = ssub.s32 2048, 2048
      %70 = vsyncadd [#allocation9], %s69
      %s71 = sshll.u32 [#allocation10], 4
      %s72 = int_to_ptr.vmem [resolvable:$true] %s71
      %77 = dma.hbm_to_vmem [thread:$0]  %s4, 2048, %s72, [#allocation9], 128, 128, 8
    $region21: #{tpu_custom_call.1} parent=1 // pred_fallthru
      _
    // Predicated region
    $region22: #{tpu_custom_call.1} parent=1 // pred_check
      _
    $region23: #{tpu_custom_call.1} parent=1 // pred_check_branch
      %79 = sbr.rel (0) target = $region25
    $region24: #{tpu_custom_call.1} parent=1 // pred_region
      _
    $region25: #{tpu_custom_call.1} parent=1 // pred_fallthru
      _
    // Predicated region
    $region26: #{tpu_custom_call.1} parent=1 // pred_check
      _
    $region27: #{tpu_custom_call.1} parent=1 // pred_check_branch
      %81 = sbr.rel (0) target = $region29
    $region28: #{tpu_custom_call.1} parent=1 // pred_region
      _
    $region29: #{tpu_custom_call.1} parent=1 // pred_fallthru
      _
    // Predicated region
    $region30: #{tpu_custom_call.1} parent=1 // pred_check
      _
    $region31: #{tpu_custom_call.1} parent=1 // pred_check_branch
      %83 = sbr.rel (0) target = $region33
    $region32: #{tpu_custom_call.1} parent=1 // pred_region
      _
    $region33: #{tpu_custom_call.1} parent=1 // pred_fallthru
      _
    // Predicated region
    $region34: #{tpu_custom_call.1} parent=1 // pred_check
      _
    $region35: #{tpu_custom_call.1} parent=1 // pred_check_branch
      %85 = sbr.rel (0) target = $region37
    $region36: #{tpu_custom_call.1} parent=1 // pred_region
      _
    $region37: #{tpu_custom_call.1} parent=1 // pred_fallthru
      _
    // Predicated region
    $region38: #{tpu_custom_call.1} parent=1 // pred_check
      _
    $region39: #{tpu_custom_call.1} parent=1 // pred_check_branch
      %87 = sbr.rel (0) target = $region41
    $region40: #{tpu_custom_call.1} parent=1 // pred_region
      %88 = dma.done [#allocation3], 256
    $region41: #{tpu_custom_call.1} parent=1 // pred_fallthru
      _
    // Predicated region
    $region42: #{tpu_custom_call.1} parent=1 // pred_check
      _
    $region43: #{tpu_custom_call.1} parent=1 // pred_check_branch
      %90 = sbr.rel (0) target = $region45
    $region44: #{tpu_custom_call.1} parent=1 // pred_region
      %91 = dma.done [#allocation6], 768
    $region45: #{tpu_custom_call.1} parent=1 // pred_fallthru
      _
    // Predicated region
    $region46: #{tpu_custom_call.1} parent=1 // pred_check
      _
    $region47: #{tpu_custom_call.1} parent=1 // pred_check_branch
      %93 = sbr.rel (0) target = $region49
    $region48: #{tpu_custom_call.1} parent=1 // pred_region
      %94 = dma.done [#allocation6], 3072
    $region49: #{tpu_custom_call.1} parent=1 // pred_fallthru
      _
    // Predicated region
    $region50: #{tpu_custom_call.1} parent=1 // pred_check
      _
    $region51: #{tpu_custom_call.1} parent=1 // pred_check_branch
      %96 = sbr.rel (0) target = $region53
    $region52: #{tpu_custom_call.1} parent=1 // pred_region
      %97 = dma.done [#allocation9], 3072
    $region53: #{tpu_custom_call.1} parent=1 // pred_fallthru
      _
    // Predicated region
    $region54: #{tpu_custom_call.1} parent=1 // pred_check
      _
    $region55: #{tpu_custom_call.1} parent=1 // pred_check_branch
      %99 = sbr.rel (0) target = $region57
    $region56: #{tpu_custom_call.1} parent=1 // pred_region
      %100 = dma.done [#allocation9], 2048
    $region57: #{tpu_custom_call.1} parent=1 // pred_fallthru
      _
    %v102 = vld [vmem:[#allocation2] sm:$0xf]
    %v103 = vld [vmem:[#allocation2 + $0x4] sm:$0xf]
    %v104 = vld [vmem:[#allocation2 + $0x8] sm:$0xf]
    %v105 = vld [vmem:[#allocation2 + $0xc] sm:$0xf]
    %v106 = vunpack.c.l.bf16 %v102
    %v107 = vunpack.c.l.bf16 %v103
    %v108 = vunpack.c.l.bf16 %v104
    %v109 = vunpack.c.l.bf16 %v105
    %v110 = vld [vmem:[#allocation10] sm:$0xff]
    %v111 = vld [vmem:[#allocation10 + $0x8] sm:$0xff]
    %v112 = vld [vmem:[#allocation10 + $0x10] sm:$0xff]
    %v113 = vld [vmem:[#allocation10 + $0x18] sm:$0xff]
    %v114 = vld [vmem:[#allocation10 + $0x20] sm:$0xff]
    %v115 = vld [vmem:[#allocation10 + $0x28] sm:$0xff]
    %v116 = vld [vmem:[#allocation10 + $0x30] sm:$0xff]
    %v117 = vld [vmem:[#allocation10 + $0x38] sm:$0xff]
    %v118 = vld [vmem:[#allocation10 + $0x40] sm:$0xff]
    %v119 = vld [vmem:[#allocation10 + $0x48] sm:$0xff]
    %v120 = vld [vmem:[#allocation10 + $0x50] sm:$0xff]
    %v121 = vld [vmem:[#allocation10 + $0x58] sm:$0xff]
    %v122 = vld [vmem:[#allocation10 + $0x60] sm:$0xff]
    %v123 = vld [vmem:[#allocation10 + $0x68] sm:$0xff]
    %v124 = vld [vmem:[#allocation10 + $0x70] sm:$0xff]
    %v125 = vld [vmem:[#allocation10 + $0x78] sm:$0xff]
    %v126 = vld [vmem:[#allocation5] sm:$0xf]
    %v127 = vld [vmem:[#allocation5 + $0x4] sm:$0xf]
    %v128 = vld [vmem:[#allocation5 + $0x8] sm:$0xf]
    %v129 = vld [vmem:[#allocation5 + $0xc] sm:$0xf]
    %v134 = vunpack.c.l.b16 %v126
    %v135 = vunpack.c.l.b16 %v127
    %v136 = vunpack.c.l.b16 %v128
    %v137 = vunpack.c.l.b16 %v129
    %v138 = vpack.c.b16 %v135, %v134
    %v139 = vpack.c.b16 %v137, %v136
    %v144 = vunpack.c.l.b16 %v102
    %v145 = vunpack.c.l.b16 %v103
    %v146 = vunpack.c.l.b16 %v104
    %v147 = vunpack.c.l.b16 %v105
    %v148 = vpack.c.b16 %v145, %v144
    %v149 = vpack.c.b16 %v147, %v146
    %vm152 = vcmask 261120
    %v154 = vsel %vm152, %v138, 0
    %v157 = vsel %vm152, %v139, 0
    %159 = vmatprep.subr.bf16.mxu0 0
    %160 = vmatpush1.bf16.msra.mxu0 %v148
    %161 = vmatprep.subr.bf16.mxu0 0
    %162 = vmatpush1.bf16.msra.mxu0 %v149
    %163 = vmatprep.subr.bf16.mxu0 0
    %164 = vmatpush1.bf16.msra.mxu0 0
    %165 = vmatprep.subr.bf16.mxu0 0
    %166 = vmatpush1.bf16.msra.mxu0 0
    %167 = vmatprep.subr.bf16.mxu0 0
    %168 = vmatpush1.bf16.msra.mxu0 0
    %169 = vmatprep.subr.bf16.mxu0 0
    %170 = vmatpush1.bf16.msra.mxu0 0
    %171 = vmatprep.subr.bf16.mxu0 0
    %172 = vmatpush1.bf16.msra.mxu0 0
    %173 = vmatprep.subr.bf16.mxu0 0
    %174 = vmatpush1.bf16.msra.mxu0 0
    %175 = vmatprep.subr.bf16.mxu0 0
    %176 = vmatpush1.bf16.msra.mxu0 0
    %177 = vmatprep.subr.bf16.mxu0 0
    %178 = vmatpush1.bf16.msra.mxu0 0
    %179 = vmatprep.subr.bf16.mxu0 0
    %180 = vmatpush1.bf16.msra.mxu0 0
    %181 = vmatprep.subr.bf16.mxu0 0
    %182 = vmatpush1.bf16.msra.mxu0 0
    %183 = vmatprep.subr.bf16.mxu0 0
    %184 = vmatpush1.bf16.msra.mxu0 0
    %185 = vmatprep.subr.bf16.mxu0 0
    %186 = vmatpush1.bf16.msra.mxu0 0
    %187 = vmatprep.subr.bf16.mxu0 0
    %188 = vmatpush1.bf16.msra.mxu0 0
    %189 = vmatprep.subr.bf16.mxu0 0
    %190 = vmatpush1.bf16.msra.mxu0 0
    %191 = vmatprep.mubr.bf16.mxu0 0
    %192 = vmatmul.mubr.bf16.gmra.mrb[0].mxu0 %v154
    %v193 = vpop.f32.mrb[0].mxu0
    %v194 = vadd.f32 0.0, %v193
    %v195 = vpop.f32.mrb[0].mxu0
    %v196 = vpop.f32.mrb[0].mxu0
    %v197 = vadd.f32 0.0, %v196
    %v198 = vpop.f32.mrb[0].mxu0
    %199 = vmatprep.mubr.bf16.mxu0 0
    %200 = vmatmul.mubr.bf16.gmra.mrb[0].mxu0 %v157
    %v201 = vpop.f32.mrb[0].mxu0
    %v202 = vadd.f32 0.0, %v201
    %v203 = vpop.f32.mrb[0].mxu0
    %v204 = vpop.f32.mrb[0].mxu0
    %v205 = vadd.f32 0.0, %v204
    %v206 = vpop.f32.mrb[0].mxu0
    %207 = vdwg.mxu0
    %v208 = vpack.c.bf16 %v197, %v194
    %v209 = vpack.c.bf16 %v205, %v202
    %v210 = vld [vmem:[#allocation7] sm:$0xf]
    %v211 = vld [vmem:[#allocation7 + $0x4] sm:$0xf]
    %v212 = vld [vmem:[#allocation7 + $0x8] sm:$0xf]
    %v213 = vld [vmem:[#allocation7 + $0xc] sm:$0xf]
    %v214 = vld [vmem:[#allocation7 + $0x10] sm:$0xf]
    %v215 = vld [vmem:[#allocation7 + $0x14] sm:$0xf]
    %v216 = vld [vmem:[#allocation7 + $0x18] sm:$0xf]
    %v217 = vld [vmem:[#allocation7 + $0x1c] sm:$0xf]
    %v218 = vld [vmem:[#allocation7 + $0x20] sm:$0xf]
    %v219 = vld [vmem:[#allocation7 + $0x24] sm:$0xf]
    %v220 = vld [vmem:[#allocation7 + $0x28] sm:$0xf]
    %v221 = vld [vmem:[#allocation7 + $0x2c] sm:$0xf]
    %v222 = vld [vmem:[#allocation7 + $0x30] sm:$0xf]
    %v223 = vld [vmem:[#allocation7 + $0x34] sm:$0xf]
    %v224 = vld [vmem:[#allocation7 + $0x38] sm:$0xf]
    %v225 = vld [vmem:[#allocation7 + $0x3c] sm:$0xf]
    %s226 = scalar_lea.vmem [#allocation5], 16
    %v227 = vld [vmem:[%s226] sm:$0xf]
    %v228 = vld [vmem:[%s226 + $0x4] sm:$0xf]
    %v229 = vld [vmem:[%s226 + $0x8] sm:$0xf]
    %v230 = vld [vmem:[%s226 + $0xc] sm:$0xf]
    %v235 = vunpack.c.l.b16 %v227
    %v236 = vunpack.c.l.b16 %v228
    %v237 = vunpack.c.l.b16 %v229
    %v238 = vunpack.c.l.b16 %v230
    %v239 = vpack.c.b16 %v236, %v235
    %v240 = vpack.c.b16 %v238, %v237
    %v242 = vsel %vm152, %v239, 0
    %v245 = vsel %vm152, %v240, 0
    %247 = vmatprep.subr.bf16.mxu0 0
    %248 = vmatpush1.bf16.msra.mxu0 %v148
    %249 = vmatprep.subr.bf16.mxu0 0
    %250 = vmatpush1.bf16.msra.mxu0 %v149
    %251 = vmatprep.subr.bf16.mxu0 0
    %252 = vmatpush1.bf16.msra.mxu0 0
    %253 = vmatprep.subr.bf16.mxu0 0
    %254 = vmatpush1.bf16.msra.mxu0 0
    %255 = vmatprep.subr.bf16.mxu0 0
    %256 = vmatpush1.bf16.msra.mxu0 0
    %257 = vmatprep.subr.bf16.mxu0 0
    %258 = vmatpush1.bf16.msra.mxu0 0
    %259 = vmatprep.subr.bf16.mxu0 0
    %260 = vmatpush1.bf16.msra.mxu0 0
    %261 = vmatprep.subr.bf16.mxu0 0
    %262 = vmatpush1.bf16.msra.mxu0 0
    %263 = vmatprep.subr.bf16.mxu0 0
    %264 = vmatpush1.bf16.msra.mxu0 0
    %265 = vmatprep.subr.bf16.mxu0 0
    %266 = vmatpush1.bf16.msra.mxu0 0
    %267 = vmatprep.subr.bf16.mxu0 0
    %268 = vmatpush1.bf16.msra.mxu0 0
    %269 = vmatprep.subr.bf16.mxu0 0
    %270 = vmatpush1.bf16.msra.mxu0 0
    %271 = vmatprep.subr.bf16.mxu0 0
    %272 = vmatpush1.bf16.msra.mxu0 0
    %273 = vmatprep.subr.bf16.mxu0 0
    %274 = vmatpush1.bf16.msra.mxu0 0
    %275 = vmatprep.subr.bf16.mxu0 0
    %276 = vmatpush1.bf16.msra.mxu0 0
    %277 = vmatprep.subr.bf16.mxu0 0
    %278 = vmatpush1.bf16.msra.mxu0 0
    %279 = vmatprep.mubr.bf16.mxu0 0
    %280 = vmatmul.mubr.bf16.gmra.mrb[0].mxu0 %v242
    %v281 = vpop.f32.mrb[0].mxu0
    %v282 = vadd.f32 0.0, %v281
    %v283 = vpop.f32.mrb[0].mxu0
    %v284 = vpop.f32.mrb[0].mxu0
    %v285 = vadd.f32 0.0, %v284
    %v286 = vpop.f32.mrb[0].mxu0
    %287 = vmatprep.mubr.bf16.mxu0 0
    %288 = vmatmul.mubr.bf16.gmra.mrb[0].mxu0 %v245
    %v289 = vpop.f32.mrb[0].mxu0
    %v290 = vadd.f32 0.0, %v289
    %v291 = vpop.f32.mrb[0].mxu0
    %v292 = vpop.f32.mrb[0].mxu0
    %v293 = vadd.f32 0.0, %v292
    %v294 = vpop.f32.mrb[0].mxu0
    %295 = vdwg.mxu0
    %v296 = vpack.c.bf16 %v285, %v282
    %v297 = vpack.c.bf16 %v293, %v290
    %s298 = scalar_lea.vmem [#allocation7], 64
    %v299 = vld [vmem:[%s298] sm:$0xf]
    %v300 = vld [vmem:[%s298 + $0x4] sm:$0xf]
    %v301 = vld [vmem:[%s298 + $0x8] sm:$0xf]
    %v302 = vld [vmem:[%s298 + $0xc] sm:$0xf]
    %v303 = vld [vmem:[%s298 + $0x10] sm:$0xf]
    %v304 = vld [vmem:[%s298 + $0x14] sm:$0xf]
    %v305 = vld [vmem:[%s298 + $0x18] sm:$0xf]
    %v306 = vld [vmem:[%s298 + $0x1c] sm:$0xf]
    %v307 = vld [vmem:[%s298 + $0x20] sm:$0xf]
    %v308 = vld [vmem:[%s298 + $0x24] sm:$0xf]
    %v309 = vld [vmem:[%s298 + $0x28] sm:$0xf]
    %v310 = vld [vmem:[%s298 + $0x2c] sm:$0xf]
    %v311 = vld [vmem:[%s298 + $0x30] sm:$0xf]
    %v312 = vld [vmem:[%s298 + $0x34] sm:$0xf]
    %v313 = vld [vmem:[%s298 + $0x38] sm:$0xf]
    %v314 = vld [vmem:[%s298 + $0x3c] sm:$0xf]
    %v331 = vunpack.c.l.b16 %v299
    %v332 = vunpack.c.l.b16 %v300
    %v333 = vunpack.c.l.b16 %v301
    %v334 = vunpack.c.l.b16 %v302
    %v335 = vunpack.c.l.b16 %v303
    %v336 = vunpack.c.l.b16 %v304
    %v337 = vunpack.c.l.b16 %v305
    %v338 = vunpack.c.l.b16 %v306
    %v339 = vunpack.c.l.b16 %v307
    %v340 = vunpack.c.l.b16 %v308
    %v341 = vunpack.c.l.b16 %v309
    %v342 = vunpack.c.l.b16 %v310
    %v343 = vunpack.c.l.b16 %v311
    %v344 = vunpack.c.l.b16 %v312
    %v345 = vunpack.c.l.b16 %v313
    %v346 = vunpack.c.l.b16 %v314
    %v347 = vpack.c.b16 %v332, %v331
    %v348 = vpack.c.b16 %v334, %v333
    %v349 = vpack.c.b16 %v336, %v335
    %v350 = vpack.c.b16 %v338, %v337
    %v351 = vpack.c.b16 %v340, %v339
    %v352 = vpack.c.b16 %v342, %v341
    %v353 = vpack.c.b16 %v344, %v343
    %v354 = vpack.c.b16 %v346, %v345
    %363 = vmatprep.subr.bf16.mxu0 0
    %364 = vmatpush1.bf16.msra.mxu0 %v347
    %365 = vmatprep.subr.bf16.mxu0 0
    %366 = vmatpush1.bf16.msra.mxu0 %v348
    %367 = vmatprep.subr.bf16.mxu0 0
    %368 = vmatpush1.bf16.msra.mxu0 %v349
    %369 = vmatprep.subr.bf16.mxu0 0
    %370 = vmatpush1.bf16.msra.mxu0 %v350
    %371 = vmatprep.subr.bf16.mxu0 0
    %372 = vmatpush1.bf16.msra.mxu0 %v351
    %373 = vmatprep.subr.bf16.mxu0 0
    %374 = vmatpush1.bf16.msra.mxu0 %v352
    %375 = vmatprep.subr.bf16.mxu0 0
    %376 = vmatpush1.bf16.msra.mxu0 %v353
    %377 = vmatprep.subr.bf16.mxu0 0
    %378 = vmatpush1.bf16.msra.mxu0 %v354
    %379 = vmatprep.subr.bf16.mxu0 0
    %380 = vmatpush1.bf16.msra.mxu0 0
    %381 = vmatprep.subr.bf16.mxu0 0
    %382 = vmatpush1.bf16.msra.mxu0 0
    %383 = vmatprep.subr.bf16.mxu0 0
    %384 = vmatpush1.bf16.msra.mxu0 0
    %385 = vmatprep.subr.bf16.mxu0 0
    %386 = vmatpush1.bf16.msra.mxu0 0
    %387 = vmatprep.subr.bf16.mxu0 0
    %388 = vmatpush1.bf16.msra.mxu0 0
    %389 = vmatprep.subr.bf16.mxu0 0
    %390 = vmatpush1.bf16.msra.mxu0 0
    %391 = vmatprep.subr.bf16.mxu0 0
    %392 = vmatpush1.bf16.msra.mxu0 0
    %393 = vmatprep.subr.bf16.mxu0 0
    %394 = vmatpush1.bf16.msra.mxu0 0
    %395 = vmatprep.mubr.bf16.mxu0 0
    %396 = vmatmul.mubr.bf16.gmra.mrb[0].mxu0 %v296
    %v397 = vpop.f32.mrb[0].mxu0
    %v398 = vadd.f32 0.0, %v397
    %v399 = vpop.f32.mrb[0].mxu0
    %v400 = vpop.f32.mrb[0].mxu0
    %v401 = vadd.f32 0.0, %v400
    %v402 = vpop.f32.mrb[0].mxu0
    %403 = vmatprep.mubr.bf16.mxu0 0
    %404 = vmatmul.mubr.bf16.gmra.mrb[0].mxu0 %v297
    %v405 = vpop.f32.mrb[0].mxu0
    %v406 = vadd.f32 0.0, %v405
    %v407 = vpop.f32.mrb[0].mxu0
    %v408 = vpop.f32.mrb[0].mxu0
    %v409 = vadd.f32 0.0, %v408
    %v410 = vpop.f32.mrb[0].mxu0
    %411 = vdwg.mxu0
    %v428 = vunpack.c.l.b16 %v210
    %v429 = vunpack.c.l.b16 %v211
    %v430 = vunpack.c.l.b16 %v212
    %v431 = vunpack.c.l.b16 %v213
    %v432 = vunpack.c.l.b16 %v214
    %v433 = vunpack.c.l.b16 %v215
    %v434 = vunpack.c.l.b16 %v216
    %v435 = vunpack.c.l.b16 %v217
    %v436 = vunpack.c.l.b16 %v218
    %v437 = vunpack.c.l.b16 %v219
    %v438 = vunpack.c.l.b16 %v220
    %v439 = vunpack.c.l.b16 %v221
    %v440 = vunpack.c.l.b16 %v222
    %v441 = vunpack.c.l.b16 %v223
    %v442 = vunpack.c.l.b16 %v224
    %v443 = vunpack.c.l.b16 %v225
    %v444 = vpack.c.b16 %v429, %v428
    %v445 = vpack.c.b16 %v431, %v430
    %v446 = vpack.c.b16 %v433, %v432
    %v447 = vpack.c.b16 %v435, %v434
    %v448 = vpack.c.b16 %v437, %v436
    %v449 = vpack.c.b16 %v439, %v438
    %v450 = vpack.c.b16 %v441, %v440
    %v451 = vpack.c.b16 %v443, %v442
    %460 = vmatprep.subr.bf16.mxu0 0
    %461 = vmatpush1.bf16.msra.mxu0 %v444
    %462 = vmatprep.subr.bf16.mxu0 0
    %463 = vmatpush1.bf16.msra.mxu0 %v445
    %464 = vmatprep.subr.bf16.mxu0 0
    %465 = vmatpush1.bf16.msra.mxu0 %v446
    %466 = vmatprep.subr.bf16.mxu0 0
    %467 = vmatpush1.bf16.msra.mxu0 %v447
    %468 = vmatprep.subr.bf16.mxu0 0
    %469 = vmatpush1.bf16.msra.mxu0 %v448
    %470 = vmatprep.subr.bf16.mxu0 0
    %471 = vmatpush1.bf16.msra.mxu0 %v449
    %472 = vmatprep.subr.bf16.mxu0 0
    %473 = vmatpush1.bf16.msra.mxu0 %v450
    %474 = vmatprep.subr.bf16.mxu0 0
    %475 = vmatpush1.bf16.msra.mxu0 %v451
    %476 = vmatprep.subr.bf16.mxu0 0
    %477 = vmatpush1.bf16.msra.mxu0 0
    %478 = vmatprep.subr.bf16.mxu0 0
    %479 = vmatpush1.bf16.msra.mxu0 0
    %480 = vmatprep.subr.bf16.mxu0 0
    %481 = vmatpush1.bf16.msra.mxu0 0
    %482 = vmatprep.subr.bf16.mxu0 0
    %483 = vmatpush1.bf16.msra.mxu0 0
    %484 = vmatprep.subr.bf16.mxu0 0
    %485 = vmatpush1.bf16.msra.mxu0 0
    %486 = vmatprep.subr.bf16.mxu0 0
    %487 = vmatpush1.bf16.msra.mxu0 0
    %488 = vmatprep.subr.bf16.mxu0 0
    %489 = vmatpush1.bf16.msra.mxu0 0
    %490 = vmatprep.subr.bf16.mxu0 0
    %491 = vmatpush1.bf16.msra.mxu0 0
    %492 = vmatprep.mubr.bf16.mxu0 0
    %493 = vmatmul.mubr.bf16.gmra.mrb[0].mxu0 %v208
    %v494 = vpop.f32.mrb[0].mxu0
    %v495 = vadd.f32 %v398, %v494
    %v496 = vpop.f32.mrb[0].mxu0
    %v497 = vpop.f32.mrb[0].mxu0
    %v498 = vadd.f32 %v401, %v497
    %v499 = vpop.f32.mrb[0].mxu0
    %500 = vmatprep.mubr.bf16.mxu0 0
    %501 = vmatmul.mubr.bf16.gmra.mrb[0].mxu0 %v209
    %v502 = vpop.f32.mrb[0].mxu0
    %v503 = vadd.f32 %v406, %v502
    %v504 = vpop.f32.mrb[0].mxu0
    %v505 = vpop.f32.mrb[0].mxu0
    %v506 = vadd.f32 %v409, %v505
    %v507 = vpop.f32.mrb[0].mxu0
    %508 = vdwg.mxu0
    %s509 = scalar_lea.vmem [#allocation5], 32
    %v510 = vld [vmem:[%s509] sm:$0xf]
    %v511 = vld [vmem:[%s509 + $0x4] sm:$0xf]
    %v512 = vld [vmem:[%s509 + $0x8] sm:$0xf]
    %v513 = vld [vmem:[%s509 + $0xc] sm:$0xf]
    %v518 = vunpack.c.l.b16 %v510
    %v519 = vunpack.c.l.b16 %v511
    %v520 = vunpack.c.l.b16 %v512
    %v521 = vunpack.c.l.b16 %v513
    %v522 = vpack.c.b16 %v519, %v518
    %v523 = vpack.c.b16 %v521, %v520
    %v525 = vsel %vm152, %v522, 0
    %v528 = vsel %vm152, %v523, 0
    %530 = vmatprep.subr.bf16.mxu0 0
    %531 = vmatpush1.bf16.msra.mxu0 %v148
    %532 = vmatprep.subr.bf16.mxu0 0
    %533 = vmatpush1.bf16.msra.mxu0 %v149
    %534 = vmatprep.subr.bf16.mxu0 0
    %535 = vmatpush1.bf16.msra.mxu0 0
    %536 = vmatprep.subr.bf16.mxu0 0
    %537 = vmatpush1.bf16.msra.mxu0 0
    %538 = vmatprep.subr.bf16.mxu0 0
    %539 = vmatpush1.bf16.msra.mxu0 0
    %540 = vmatprep.subr.bf16.mxu0 0
    %541 = vmatpush1.bf16.msra.mxu0 0
    %542 = vmatprep.subr.bf16.mxu0 0
    %543 = vmatpush1.bf16.msra.mxu0 0
    %544 = vmatprep.subr.bf16.mxu0 0
    %545 = vmatpush1.bf16.msra.mxu0 0
    %546 = vmatprep.subr.bf16.mxu0 0
    %547 = vmatpush1.bf16.msra.mxu0 0
    %548 = vmatprep.subr.bf16.mxu0 0
    %549 = vmatpush1.bf16.msra.mxu0 0
    %550 = vmatprep.subr.bf16.mxu0 0
    %551 = vmatpush1.bf16.msra.mxu0 0
    %552 = vmatprep.subr.bf16.mxu0 0
    %553 = vmatpush1.bf16.msra.mxu0 0
    %554 = vmatprep.subr.bf16.mxu0 0
    %555 = vmatpush1.bf16.msra.mxu0 0
    %556 = vmatprep.subr.bf16.mxu0 0
    %557 = vmatpush1.bf16.msra.mxu0 0
    %558 = vmatprep.subr.bf16.mxu0 0
    %559 = vmatpush1.bf16.msra.mxu0 0
    %560 = vmatprep.subr.bf16.mxu0 0
    %561 = vmatpush1.bf16.msra.mxu0 0
    %562 = vmatprep.mubr.bf16.mxu0 0
    %563 = vmatmul.mubr.bf16.gmra.mrb[0].mxu0 %v525
    %v564 = vpop.f32.mrb[0].mxu0
    %v565 = vadd.f32 0.0, %v564
    %v566 = vpop.f32.mrb[0].mxu0
    %v567 = vpop.f32.mrb[0].mxu0
    %v568 = vadd.f32 0.0, %v567
    %v569 = vpop.f32.mrb[0].mxu0
    %570 = vmatprep.mubr.bf16.mxu0 0
    %571 = vmatmul.mubr.bf16.gmra.mrb[0].mxu0 %v528
    %v572 = vpop.f32.mrb[0].mxu0
    %v573 = vadd.f32 0.0, %v572
    %v574 = vpop.f32.mrb[0].mxu0
    %v575 = vpop.f32.mrb[0].mxu0
    %v576 = vadd.f32 0.0, %v575
    %v577 = vpop.f32.mrb[0].mxu0
    %578 = vdwg.mxu0
    %v579 = vpack.c.bf16 %v568, %v565
    %v580 = vpack.c.bf16 %v576, %v573
    %s581 = scalar_lea.vmem [#allocation7], 128
    %v582 = vld [vmem:[%s581] sm:$0xf]
    %v583 = vld [vmem:[%s581 + $0x4] sm:$0xf]
    %v584 = vld [vmem:[%s581 + $0x8] sm:$0xf]
    %v585 = vld [vmem:[%s581 + $0xc] sm:$0xf]
    %v586 = vld [vmem:[%s581 + $0x10] sm:$0xf]
    %v587 = vld [vmem:[%s581 + $0x14] sm:$0xf]
    %v588 = vld [vmem:[%s581 + $0x18] sm:$0xf]
    %v589 = vld [vmem:[%s581 + $0x1c] sm:$0xf]
    %v590 = vld [vmem:[%s581 + $0x20] sm:$0xf]
    %v591 = vld [vmem:[%s581 + $0x24] sm:$0xf]
    %v592 = vld [vmem:[%s581 + $0x28] sm:$0xf]
    %v593 = vld [vmem:[%s581 + $0x2c] sm:$0xf]
    %v594 = vld [vmem:[%s581 + $0x30] sm:$0xf]
    %v595 = vld [vmem:[%s581 + $0x34] sm:$0xf]
    %v596 = vld [vmem:[%s581 + $0x38] sm:$0xf]
    %v597 = vld [vmem:[%s581 + $0x3c] sm:$0xf]
    %v614 = vunpack.c.l.b16 %v582
    %v615 = vunpack.c.l.b16 %v583
    %v616 = vunpack.c.l.b16 %v584
    %v617 = vunpack.c.l.b16 %v585
    %v618 = vunpack.c.l.b16 %v586
    %v619 = vunpack.c.l.b16 %v587
    %v620 = vunpack.c.l.b16 %v588
    %v621 = vunpack.c.l.b16 %v589
    %v622 = vunpack.c.l.b16 %v590
    %v623 = vunpack.c.l.b16 %v591
    %v624 = vunpack.c.l.b16 %v592
    %v625 = vunpack.c.l.b16 %v593
    %v626 = vunpack.c.l.b16 %v594
    %v627 = vunpack.c.l.b16 %v595
    %v628 = vunpack.c.l.b16 %v596
    %v629 = vunpack.c.l.b16 %v597
    %v630 = vpack.c.b16 %v615, %v614
    %v631 = vpack.c.b16 %v617, %v616
    %v632 = vpack.c.b16 %v619, %v618
    %v633 = vpack.c.b16 %v621, %v620
    %v634 = vpack.c.b16 %v623, %v622
    %v635 = vpack.c.b16 %v625, %v624
    %v636 = vpack.c.b16 %v627, %v626
    %v637 = vpack.c.b16 %v629, %v628
    %646 = vmatprep.subr.bf16.mxu0 0
    %647 = vmatpush1.bf16.msra.mxu0 %v630
    %648 = vmatprep.subr.bf16.mxu0 0
    %649 = vmatpush1.bf16.msra.mxu0 %v631
    %650 = vmatprep.subr.bf16.mxu0 0
    %651 = vmatpush1.bf16.msra.mxu0 %v632
    %652 = vmatprep.subr.bf16.mxu0 0
    %653 = vmatpush1.bf16.msra.mxu0 %v633
    %654 = vmatprep.subr.bf16.mxu0 0
    %655 = vmatpush1.bf16.msra.mxu0 %v634
    %656 = vmatprep.subr.bf16.mxu0 0
    %657 = vmatpush1.bf16.msra.mxu0 %v635
    %658 = vmatprep.subr.bf16.mxu0 0
    %659 = vmatpush1.bf16.msra.mxu0 %v636
    %660 = vmatprep.subr.bf16.mxu0 0
    %661 = vmatpush1.bf16.msra.mxu0 %v637
    %662 = vmatprep.subr.bf16.mxu0 0
    %663 = vmatpush1.bf16.msra.mxu0 0
    %664 = vmatprep.subr.bf16.mxu0 0
    %665 = vmatpush1.bf16.msra.mxu0 0
    %666 = vmatprep.subr.bf16.mxu0 0
    %667 = vmatpush1.bf16.msra.mxu0 0
    %668 = vmatprep.subr.bf16.mxu0 0
    %669 = vmatpush1.bf16.msra.mxu0 0
    %670 = vmatprep.subr.bf16.mxu0 0
    %671 = vmatpush1.bf16.msra.mxu0 0
    %672 = vmatprep.subr.bf16.mxu0 0
    %673 = vmatpush1.bf16.msra.mxu0 0
    %674 = vmatprep.subr.bf16.mxu0 0
    %675 = vmatpush1.bf16.msra.mxu0 0
    %676 = vmatprep.subr.bf16.mxu0 0
    %677 = vmatpush1.bf16.msra.mxu0 0
    %678 = vmatprep.mubr.bf16.mxu0 0
    %679 = vmatmul.mubr.bf16.gmra.mrb[0].mxu0 %v579
    %v680 = vpop.f32.mrb[0].mxu0
    %v681 = vadd.f32 0.0, %v680
    %v682 = vpop.f32.mrb[0].mxu0
    %v683 = vpop.f32.mrb[0].mxu0
    %v684 = vadd.f32 0.0, %v683
    %v685 = vpop.f32.mrb[0].mxu0
    %686 = vmatprep.mubr.bf16.mxu0 0
    %687 = vmatmul.mubr.bf16.gmra.mrb[0].mxu0 %v580
    %v688 = vpop.f32.mrb[0].mxu0
    %v689 = vadd.f32 0.0, %v688
    %v690 = vpop.f32.mrb[0].mxu0
    %v691 = vpop.f32.mrb[0].mxu0
    %v692 = vadd.f32 0.0, %v691
    %v693 = vpop.f32.mrb[0].mxu0
    %694 = vdwg.mxu0
    %v695 = vadd.f32 %v495, %v681
    %v696 = vadd.f32 %v498, %v684
    %v697 = vadd.f32 %v503, %v689
    %v698 = vadd.f32 %v506, %v692
    %v699 = vld [vmem:[%s5] sm:$0x1]
    %v700 = vld [vmem:[%s6] sm:$0x1]
    %701 = vmatprep.subr.mxu0 0.0
    %702 = vmatpush1.msra.mxu0 %v110
    %703 = vmatprep.subr.mxu0 0.0
    %704 = vmatpush1.msra.mxu0 %v111
    %705 = vmatprep.subr.mxu0 0.0
    %706 = vmatpush1.msra.mxu0 %v112
    %707 = vmatprep.subr.mxu0 0.0
    %708 = vmatpush1.msra.mxu0 %v113
    %709 = vmatprep.subr.mxu0 0.0
    %710 = vmatpush1.msra.mxu0 %v114
    %711 = vmatprep.subr.mxu0 0.0
    %712 = vmatpush1.msra.mxu0 %v115
    %713 = vmatprep.subr.mxu0 0.0
    %714 = vmatpush1.msra.mxu0 %v116
    %715 = vmatprep.subr.mxu0 0.0
    %716 = vmatpush1.msra.mxu0 %v117
    %717 = vmatprep.subr.mxu0 0.0
    %718 = vmatpush1.msra.mxu0 %v118
    %719 = vmatprep.subr.mxu0 0.0
    %720 = vmatpush1.msra.mxu0 %v119
    %721 = vmatprep.subr.mxu0 0.0
    %722 = vmatpush1.msra.mxu0 %v120
    %723 = vmatprep.subr.mxu0 0.0
    %724 = vmatpush1.msra.mxu0 %v121
    %725 = vmatprep.subr.mxu0 0.0
    %726 = vmatpush1.msra.mxu0 %v122
    %727 = vmatprep.subr.mxu0 0.0
    %728 = vmatpush1.msra.mxu0 %v123
    %729 = vmatprep.subr.mxu0 0.0
    %730 = vmatpush1.msra.mxu0 %v124
    %731 = vmatprep.subr.mxu0 0.0
    %732 = vmatpush1.msra.mxu0 %v125
    %733 = vmatprep.subr.mxu0 0.0
    %734 = vmatpush1.msra.mxu0 0.0
    %735 = vmatprep.subr.mxu0 0.0
    %736 = vmatpush1.msra.mxu0 0.0
    %737 = vmatprep.subr.mxu0 0.0
    %738 = vmatpush1.msra.mxu0 0.0
    %739 = vmatprep.subr.mxu0 0.0
    %740 = vmatpush1.msra.mxu0 0.0
    %741 = vmatprep.subr.mxu0 0.0
    %742 = vmatpush1.msra.mxu0 0.0
    %743 = vmatprep.subr.mxu0 0.0
    %744 = vmatpush1.msra.mxu0 0.0
    %745 = vmatprep.subr.mxu0 0.0
    %746 = vmatpush1.msra.mxu0 0.0
    %747 = vmatprep.subr.mxu0 0.0
    %748 = vmatpush1.msra.mxu0 0.0
    %749 = vmatprep.subr.mxu0 0.0
    %750 = vmatpush1.msra.mxu0 0.0
    %751 = vmatprep.subr.mxu0 0.0
    %752 = vmatpush1.msra.mxu0 0.0
    %753 = vmatprep.subr.mxu0 0.0
    %754 = vmatpush1.msra.mxu0 0.0
    %755 = vmatprep.subr.mxu0 0.0
    %756 = vmatpush1.msra.mxu0 0.0
    %757 = vmatprep.subr.mxu0 0.0
    %758 = vmatpush1.msra.mxu0 0.0
    %759 = vmatprep.subr.mxu0 0.0
    %760 = vmatpush1.msra.mxu0 0.0
    %761 = vmatprep.subr.mxu0 0.0
    %762 = vmatpush1.msra.mxu0 0.0
    %763 = vmatprep.subr.mxu0 0.0
    %764 = vmatpush1.msra.mxu0 0.0
    %765 = vmatprep.mubr.f32.mxu0 0.0
    %766 = vmatmul.mubr.f32.gmra.mrb[0].mxu0 %v695
    %v767 = vpop.f32.mrb[0].mxu0
    %v768 = vadd.f32 0.0, %v767
    %v769 = vpop.f32.mrb[0].mxu0
    %770 = vmatprep.mubr.f32.mxu0 0.0
    %771 = vmatmul.mubr.f32.gmra.mrb[0].mxu0 %v696
    %v772 = vpop.f32.mrb[0].mxu0
    %v773 = vadd.f32 0.0, %v772
    %v774 = vpop.f32.mrb[0].mxu0
    %775 = vmatprep.mubr.f32.mxu0 0.0
    %776 = vmatmul.mubr.f32.gmra.mrb[0].mxu0 %v697
    %v777 = vpop.f32.mrb[0].mxu0
    %v778 = vadd.f32 0.0, %v777
    %v779 = vpop.f32.mrb[0].mxu0
    %780 = vmatprep.mubr.f32.mxu0 0.0
    %781 = vmatmul.mubr.f32.gmra.mrb[0].mxu0 %v698
    %v782 = vpop.f32.mrb[0].mxu0
    %v783 = vadd.f32 0.0, %v782
    %v784 = vpop.f32.mrb[0].mxu0
    %785 = vdwg.mxu0
    %v786 = vadd.f32 %v768, %v773
    %v787 = vadd.f32 %v786, %v778
    %v788 = vadd.f32 %v787, %v783
    %v789 = vrot.slane %v788, 4
    %v790 = vadd.f32 %v788, %v789
    %v791 = vrot.slane %v790, 2
    %v792 = vadd.f32 %v790, %v791
    %v793 = vrot.slane %v792, 1
    %v794 = vadd.f32 %v792, %v793
    %v795 = vmul.f32 %v794, 0.001953125
    %v796 = vsub.f32 %v695, %v795
    %v797 = vsub.f32 %v696, %v795
    %v798 = vsub.f32 %v697, %v795
    %v799 = vsub.f32 %v698, %v795
    %v800 = vmul.f32 %v796, %v796
    %v801 = vmul.f32 %v797, %v797
    %v802 = vmul.f32 %v798, %v798
    %v803 = vmul.f32 %v799, %v799
    %804 = vmatprep.subr.mxu0 0.0
    %805 = vmatpush1.msra.mxu0 %v110
    %806 = vmatprep.subr.mxu0 0.0
    %807 = vmatpush1.msra.mxu0 %v111
    %808 = vmatprep.subr.mxu0 0.0
    %809 = vmatpush1.msra.mxu0 %v112
    %810 = vmatprep.subr.mxu0 0.0
    %811 = vmatpush1.msra.mxu0 %v113
    %812 = vmatprep.subr.mxu0 0.0
    %813 = vmatpush1.msra.mxu0 %v114
    %814 = vmatprep.subr.mxu0 0.0
    %815 = vmatpush1.msra.mxu0 %v115
    %816 = vmatprep.subr.mxu0 0.0
    %817 = vmatpush1.msra.mxu0 %v116
    %818 = vmatprep.subr.mxu0 0.0
    %819 = vmatpush1.msra.mxu0 %v117
    %820 = vmatprep.subr.mxu0 0.0
    %821 = vmatpush1.msra.mxu0 %v118
    %822 = vmatprep.subr.mxu0 0.0
    %823 = vmatpush1.msra.mxu0 %v119
    %824 = vmatprep.subr.mxu0 0.0
    %825 = vmatpush1.msra.mxu0 %v120
    %826 = vmatprep.subr.mxu0 0.0
    %827 = vmatpush1.msra.mxu0 %v121
    %828 = vmatprep.subr.mxu0 0.0
    %829 = vmatpush1.msra.mxu0 %v122
    %830 = vmatprep.subr.mxu0 0.0
    %831 = vmatpush1.msra.mxu0 %v123
    %832 = vmatprep.subr.mxu0 0.0
    %833 = vmatpush1.msra.mxu0 %v124
    %834 = vmatprep.subr.mxu0 0.0
    %835 = vmatpush1.msra.mxu0 %v125
    %836 = vmatprep.subr.mxu0 0.0
    %837 = vmatpush1.msra.mxu0 0.0
    %838 = vmatprep.subr.mxu0 0.0
    %839 = vmatpush1.msra.mxu0 0.0
    %840 = vmatprep.subr.mxu0 0.0
    %841 = vmatpush1.msra.mxu0 0.0
    %842 = vmatprep.subr.mxu0 0.0
    %843 = vmatpush1.msra.mxu0 0.0
    %844 = vmatprep.subr.mxu0 0.0
    %845 = vmatpush1.msra.mxu0 0.0
    %846 = vmatprep.subr.mxu0 0.0
    %847 = vmatpush1.msra.mxu0 0.0
    %848 = vmatprep.subr.mxu0 0.0
    %849 = vmatpush1.msra.mxu0 0.0
    %850 = vmatprep.subr.mxu0 0.0
    %851 = vmatpush1.msra.mxu0 0.0
    %852 = vmatprep.subr.mxu0 0.0
    %853 = vmatpush1.msra.mxu0 0.0
    %854 = vmatprep.subr.mxu0 0.0
    %855 = vmatpush1.msra.mxu0 0.0
    %856 = vmatprep.subr.mxu0 0.0
    %857 = vmatpush1.msra.mxu0 0.0
    %858 = vmatprep.subr.mxu0 0.0
    %859 = vmatpush1.msra.mxu0 0.0
    %860 = vmatprep.subr.mxu0 0.0
    %861 = vmatpush1.msra.mxu0 0.0
    %862 = vmatprep.subr.mxu0 0.0
    %863 = vmatpush1.msra.mxu0 0.0
    %864 = vmatprep.subr.mxu0 0.0
    %865 = vmatpush1.msra.mxu0 0.0
    %866 = vmatprep.subr.mxu0 0.0
    %867 = vmatpush1.msra.mxu0 0.0
    %868 = vmatprep.mubr.f32.mxu0 0.0
    %869 = vmatmul.mubr.f32.gmra.mrb[0].mxu0 %v800
    %v870 = vpop.f32.mrb[0].mxu0
    %v871 = vadd.f32 0.0, %v870
    %v872 = vpop.f32.mrb[0].mxu0
    %873 = vmatprep.mubr.f32.mxu0 0.0
    %874 = vmatmul.mubr.f32.gmra.mrb[0].mxu0 %v801
    %v875 = vpop.f32.mrb[0].mxu0
    %v876 = vadd.f32 0.0, %v875
    %v877 = vpop.f32.mrb[0].mxu0
    %878 = vmatprep.mubr.f32.mxu0 0.0
    %879 = vmatmul.mubr.f32.gmra.mrb[0].mxu0 %v802
    %v880 = vpop.f32.mrb[0].mxu0
    %v881 = vadd.f32 0.0, %v880
    %v882 = vpop.f32.mrb[0].mxu0
    %883 = vmatprep.mubr.f32.mxu0 0.0
    %884 = vmatmul.mubr.f32.gmra.mrb[0].mxu0 %v803
    %v885 = vpop.f32.mrb[0].mxu0
    %v886 = vadd.f32 0.0, %v885
    %v887 = vpop.f32.mrb[0].mxu0
    %888 = vdwg.mxu0
    %v889 = vadd.f32 %v871, %v876
    %v890 = vadd.f32 %v889, %v881
    %v891 = vadd.f32 %v890, %v886
    %v892 = vrot.slane %v891, 4
    %v893 = vadd.f32 %v891, %v892
    %v894 = vrot.slane %v893, 2
    %v895 = vadd.f32 %v893, %v894
    %v896 = vrot.slane %v895, 1
    %v897 = vadd.f32 %v895, %v896
    %v898 = vmul.f32 %v897, 0.001953125
    %v899 = vadd.f32 %v898, 1e-05
    %v900 = vrsqrt.pop %v899
    %v901 = vmul.f32 %v699, %v900
    %v903 = vlaneseq
    %v904 = vshrl.u32 %v903, 7
    %v905 = vsub.s32 0, %v904
    %v906 = vrot.slane %v901, %v905
    %v908 = vmul.f32 %v796, %v906
    %v909 = vmul.f32 %v797, %v906
    %v910 = vmul.f32 %v798, %v906
    %v911 = vmul.f32 %v799, %v906
    %v913 = vlaneseq
    %v914 = vshrl.u32 %v913, 7
    %v915 = vsub.s32 0, %v914
    %v916 = vrot.slane %v700, %v915
    %v918 = vadd.f32 %v908, %v916
    %v919 = vadd.f32 %v909, %v916
    %v920 = vadd.f32 %v910, %v916
    %v921 = vadd.f32 %v911, %v916
    %v922 = vmax.f32 %v918, 0.0
    %v923 = vmax.f32 %v919, 0.0
    %v924 = vmax.f32 %v920, 0.0
    %v925 = vmax.f32 %v921, 0.0
    %v926 = vpack.c.bf16 %v923, %v922
    %v927 = vpack.c.bf16 %v925, %v924
    %928 = vmatprep.subr.bf16.mxu0 0
    %929 = vmatpush1.bf16.msra.mxu0 %v926
    %930 = vmatprep.subr.bf16.mxu0 0
    %931 = vmatpush1.bf16.msra.mxu0 %v927
    %932 = vmatprep.subr.bf16.mxu0 0
    %933 = vmatpush1.bf16.msra.mxu0 0
    %934 = vmatprep.subr.bf16.mxu0 0
    %935 = vmatpush1.bf16.msra.mxu0 0
    %936 = vmatprep.subr.bf16.mxu0 0
    %937 = vmatpush1.bf16.msra.mxu0 0
    %938 = vmatprep.subr.bf16.mxu0 0
    %939 = vmatpush1.bf16.msra.mxu0 0
    %940 = vmatprep.subr.bf16.mxu0 0
    %941 = vmatpush1.bf16.msra.mxu0 0
    %942 = vmatprep.subr.bf16.mxu0 0
    %943 = vmatpush1.bf16.msra.mxu0 0
    %944 = vmatprep.subr.bf16.mxu0 0
    %945 = vmatpush1.bf16.msra.mxu0 0
    %946 = vmatprep.subr.bf16.mxu0 0
    %947 = vmatpush1.bf16.msra.mxu0 0
    %948 = vmatprep.subr.bf16.mxu0 0
    %949 = vmatpush1.bf16.msra.mxu0 0
    %950 = vmatprep.subr.bf16.mxu0 0
    %951 = vmatpush1.bf16.msra.mxu0 0
    %952 = vmatprep.subr.bf16.mxu0 0
    %953 = vmatpush1.bf16.msra.mxu0 0
    %954 = vmatprep.subr.bf16.mxu0 0
    %955 = vmatpush1.bf16.msra.mxu0 0
    %956 = vmatprep.subr.bf16.mxu0 0
    %957 = vmatpush1.bf16.msra.mxu0 0
    %958 = vmatprep.subr.bf16.mxu0 0
    %959 = vmatpush1.bf16.msra.mxu0 0
    %960 = vmatprep.mubr.bf16.mxu0 0
    %961 = vmatmul.mubr.bf16.gmra.mrb[0].mxu0 %v154
    %v962 = vpop.f32.mrb[0].mxu0
    %v963 = vadd.f32 0.0, %v962
    %v964 = vpop.f32.mrb[0].mxu0
    %v965 = vpop.f32.mrb[0].mxu0
    %v966 = vadd.f32 0.0, %v965
    %v967 = vpop.f32.mrb[0].mxu0
    %968 = vmatprep.mubr.bf16.mxu0 0
    %969 = vmatmul.mubr.bf16.gmra.mrb[0].mxu0 %v157
    %v970 = vpop.f32.mrb[0].mxu0
    %v971 = vadd.f32 0.0, %v970
    %v972 = vpop.f32.mrb[0].mxu0
    %v973 = vpop.f32.mrb[0].mxu0
    %v974 = vadd.f32 0.0, %v973
    %v975 = vpop.f32.mrb[0].mxu0
    %976 = vdwg.mxu0
    %v977 = vpack.c.bf16 %v966, %v963
    %v978 = vpack.c.bf16 %v974, %v971
    %v979 = vld [vmem:[#allocation8] sm:$0xf]
    %v980 = vld [vmem:[#allocation8 + $0x4] sm:$0xf]
    %v981 = vld [vmem:[#allocation8 + $0x8] sm:$0xf]
    %v982 = vld [vmem:[#allocation8 + $0xc] sm:$0xf]
    %v983 = vld [vmem:[#allocation8 + $0x10] sm:$0xf]
    %v984 = vld [vmem:[#allocation8 + $0x14] sm:$0xf]
    %v985 = vld [vmem:[#allocation8 + $0x18] sm:$0xf]
    %v986 = vld [vmem:[#allocation8 + $0x1c] sm:$0xf]
    %v987 = vld [vmem:[#allocation8 + $0x20] sm:$0xf]
    %v988 = vld [vmem:[#allocation8 + $0x24] sm:$0xf]
    %v989 = vld [vmem:[#allocation8 + $0x28] sm:$0xf]
    %v990 = vld [vmem:[#allocation8 + $0x2c] sm:$0xf]
    %v991 = vld [vmem:[#allocation8 + $0x30] sm:$0xf]
    %v992 = vld [vmem:[#allocation8 + $0x34] sm:$0xf]
    %v993 = vld [vmem:[#allocation8 + $0x38] sm:$0xf]
    %v994 = vld [vmem:[#allocation8 + $0x3c] sm:$0xf]
    %995 = vmatprep.subr.bf16.mxu0 0
    %996 = vmatpush1.bf16.msra.mxu0 %v926
    %997 = vmatprep.subr.bf16.mxu0 0
    %998 = vmatpush1.bf16.msra.mxu0 %v927
    %999 = vmatprep.subr.bf16.mxu0 0
    %1000 = vmatpush1.bf16.msra.mxu0 0
    %1001 = vmatprep.subr.bf16.mxu0 0
    %1002 = vmatpush1.bf16.msra.mxu0 0
    %1003 = vmatprep.subr.bf16.mxu0 0
    %1004 = vmatpush1.bf16.msra.mxu0 0
    %1005 = vmatprep.subr.bf16.mxu0 0
    %1006 = vmatpush1.bf16.msra.mxu0 0
    %1007 = vmatprep.subr.bf16.mxu0 0
    %1008 = vmatpush1.bf16.msra.mxu0 0
    %1009 = vmatprep.subr.bf16.mxu0 0
    %1010 = vmatpush1.bf16.msra.mxu0 0
    %1011 = vmatprep.subr.bf16.mxu0 0
    %1012 = vmatpush1.bf16.msra.mxu0 0
    %1013 = vmatprep.subr.bf16.mxu0 0
    %1014 = vmatpush1.bf16.msra.mxu0 0
    %1015 = vmatprep.subr.bf16.mxu0 0
    %1016 = vmatpush1.bf16.msra.mxu0 0
    %1017 = vmatprep.subr.bf16.mxu0 0
    %1018 = vmatpush1.bf16.msra.mxu0 0
    %1019 = vmatprep.subr.bf16.mxu0 0
    %1020 = vmatpush1.bf16.msra.mxu0 0
    %1021 = vmatprep.subr.bf16.mxu0 0
    %1022 = vmatpush1.bf16.msra.mxu0 0
    %1023 = vmatprep.subr.bf16.mxu0 0
    %1024 = vmatpush1.bf16.msra.mxu0 0
    %1025 = vmatprep.subr.bf16.mxu0 0
    %1026 = vmatpush1.bf16.msra.mxu0 0
    %1027 = vmatprep.mubr.bf16.mxu0 0
    %1028 = vmatmul.mubr.bf16.gmra.mrb[0].mxu0 %v242
    %v1029 = vpop.f32.mrb[0].mxu0
    %v1030 = vadd.f32 0.0, %v1029
    %v1031 = vpop.f32.mrb[0].mxu0
    %v1032 = vpop.f32.mrb[0].mxu0
    %v1033 = vadd.f32 0.0, %v1032
    %v1034 = vpop.f32.mrb[0].mxu0
    %1035 = vmatprep.mubr.bf16.mxu0 0
    %1036 = vmatmul.mubr.bf16.gmra.mrb[0].mxu0 %v245
    %v1037 = vpop.f32.mrb[0].mxu0
    %v1038 = vadd.f32 0.0, %v1037
    %v1039 = vpop.f32.mrb[0].mxu0
    %v1040 = vpop.f32.mrb[0].mxu0
    %v1041 = vadd.f32 0.0, %v1040
    %v1042 = vpop.f32.mrb[0].mxu0
    %1043 = vdwg.mxu0
    %v1044 = vpack.c.bf16 %v1033, %v1030
    %v1045 = vpack.c.bf16 %v1041, %v1038
    %s1046 = scalar_lea.vmem [#allocation8], 64
    %v1047 = vld [vmem:[%s1046] sm:$0xf]
    %v1048 = vld [vmem:[%s1046 + $0x4] sm:$0xf]
    %v1049 = vld [vmem:[%s1046 + $0x8] sm:$0xf]
    %v1050 = vld [vmem:[%s1046 + $0xc] sm:$0xf]
    %v1051 = vld [vmem:[%s1046 + $0x10] sm:$0xf]
    %v1052 = vld [vmem:[%s1046 + $0x14] sm:$0xf]
    %v1053 = vld [vmem:[%s1046 + $0x18] sm:$0xf]
    %v1054 = vld [vmem:[%s1046 + $0x1c] sm:$0xf]
    %v1055 = vld [vmem:[%s1046 + $0x20] sm:$0xf]
    %v1056 = vld [vmem:[%s1046 + $0x24] sm:$0xf]
    %v1057 = vld [vmem:[%s1046 + $0x28] sm:$0xf]
    %v1058 = vld [vmem:[%s1046 + $0x2c] sm:$0xf]
    %v1059 = vld [vmem:[%s1046 + $0x30] sm:$0xf]
    %v1060 = vld [vmem:[%s1046 + $0x34] sm:$0xf]
    %v1061 = vld [vmem:[%s1046 + $0x38] sm:$0xf]
    %v1062 = vld [vmem:[%s1046 + $0x3c] sm:$0xf]
    %v1079 = vunpack.c.l.b16 %v1047
    %v1080 = vunpack.c.l.b16 %v1048
    %v1081 = vunpack.c.l.b16 %v1049
    %v1082 = vunpack.c.l.b16 %v1050
    %v1083 = vunpack.c.l.b16 %v1051
    %v1084 = vunpack.c.l.b16 %v1052
    %v1085 = vunpack.c.l.b16 %v1053
    %v1086 = vunpack.c.l.b16 %v1054
    %v1087 = vunpack.c.l.b16 %v1055
    %v1088 = vunpack.c.l.b16 %v1056
    %v1089 = vunpack.c.l.b16 %v1057
    %v1090 = vunpack.c.l.b16 %v1058
    %v1091 = vunpack.c.l.b16 %v1059
    %v1092 = vunpack.c.l.b16 %v1060
    %v1093 = vunpack.c.l.b16 %v1061
    %v1094 = vunpack.c.l.b16 %v1062
    %v1095 = vpack.c.b16 %v1080, %v1079
    %v1096 = vpack.c.b16 %v1082, %v1081
    %v1097 = vpack.c.b16 %v1084, %v1083
    %v1098 = vpack.c.b16 %v1086, %v1085
    %v1099 = vpack.c.b16 %v1088, %v1087
    %v1100 = vpack.c.b16 %v1090, %v1089
    %v1101 = vpack.c.b16 %v1092, %v1091
    %v1102 = vpack.c.b16 %v1094, %v1093
    %1111 = vmatprep.subr.bf16.mxu0 0
    %1112 = vmatpush1.bf16.msra.mxu0 %v1095
    %1113 = vmatprep.subr.bf16.mxu0 0
    %1114 = vmatpush1.bf16.msra.mxu0 %v1096
    %1115 = vmatprep.subr.bf16.mxu0 0
    %1116 = vmatpush1.bf16.msra.mxu0 %v1097
    %1117 = vmatprep.subr.bf16.mxu0 0
    %1118 = vmatpush1.bf16.msra.mxu0 %v1098
    %1119 = vmatprep.subr.bf16.mxu0 0
    %1120 = vmatpush1.bf16.msra.mxu0 %v1099
    %1121 = vmatprep.subr.bf16.mxu0 0
    %1122 = vmatpush1.bf16.msra.mxu0 %v1100
    %1123 = vmatprep.subr.bf16.mxu0 0
    %1124 = vmatpush1.bf16.msra.mxu0 %v1101
    %1125 = vmatprep.subr.bf16.mxu0 0
    %1126 = vmatpush1.bf16.msra.mxu0 %v1102
    %1127 = vmatprep.subr.bf16.mxu0 0
    %1128 = vmatpush1.bf16.msra.mxu0 0
    %1129 = vmatprep.subr.bf16.mxu0 0
    %1130 = vmatpush1.bf16.msra.mxu0 0
    %1131 = vmatprep.subr.bf16.mxu0 0
    %1132 = vmatpush1.bf16.msra.mxu0 0
    %1133 = vmatprep.subr.bf16.mxu0 0
    %1134 = vmatpush1.bf16.msra.mxu0 0
    %1135 = vmatprep.subr.bf16.mxu0 0
    %1136 = vmatpush1.bf16.msra.mxu0 0
    %1137 = vmatprep.subr.bf16.mxu0 0
    %1138 = vmatpush1.bf16.msra.mxu0 0
    %1139 = vmatprep.subr.bf16.mxu0 0
    %1140 = vmatpush1.bf16.msra.mxu0 0
    %1141 = vmatprep.subr.bf16.mxu0 0
    %1142 = vmatpush1.bf16.msra.mxu0 0
    %1143 = vmatprep.mubr.bf16.mxu0 0
    %1144 = vmatmul.mubr.bf16.gmra.mrb[0].mxu0 %v1044
    %v1145 = vpop.f32.mrb[0].mxu0
    %v1146 = vadd.f32 0.0, %v1145
    %v1147 = vpop.f32.mrb[0].mxu0
    %v1148 = vpop.f32.mrb[0].mxu0
    %v1149 = vadd.f32 0.0, %v1148
    %v1150 = vpop.f32.mrb[0].mxu0
    %1151 = vmatprep.mubr.bf16.mxu0 0
    %1152 = vmatmul.mubr.bf16.gmra.mrb[0].mxu0 %v1045
    %v1153 = vpop.f32.mrb[0].mxu0
    %v1154 = vadd.f32 0.0, %v1153
    %v1155 = vpop.f32.mrb[0].mxu0
    %v1156 = vpop.f32.mrb[0].mxu0
    %v1157 = vadd.f32 0.0, %v1156
    %v1158 = vpop.f32.mrb[0].mxu0
    %1159 = vdwg.mxu0
    %v1176 = vunpack.c.l.b16 %v979
    %v1177 = vunpack.c.l.b16 %v980
    %v1178 = vunpack.c.l.b16 %v981
    %v1179 = vunpack.c.l.b16 %v982
    %v1180 = vunpack.c.l.b16 %v983
    %v1181 = vunpack.c.l.b16 %v984
    %v1182 = vunpack.c.l.b16 %v985
    %v1183 = vunpack.c.l.b16 %v986
    %v1184 = vunpack.c.l.b16 %v987
    %v1185 = vunpack.c.l.b16 %v988
    %v1186 = vunpack.c.l.b16 %v989
    %v1187 = vunpack.c.l.b16 %v990
    %v1188 = vunpack.c.l.b16 %v991
    %v1189 = vunpack.c.l.b16 %v992
    %v1190 = vunpack.c.l.b16 %v993
    %v1191 = vunpack.c.l.b16 %v994
    %v1192 = vpack.c.b16 %v1177, %v1176
    %v1193 = vpack.c.b16 %v1179, %v1178
    %v1194 = vpack.c.b16 %v1181, %v1180
    %v1195 = vpack.c.b16 %v1183, %v1182
    %v1196 = vpack.c.b16 %v1185, %v1184
    %v1197 = vpack.c.b16 %v1187, %v1186
    %v1198 = vpack.c.b16 %v1189, %v1188
    %v1199 = vpack.c.b16 %v1191, %v1190
    %1208 = vmatprep.subr.bf16.mxu0 0
    %1209 = vmatpush1.bf16.msra.mxu0 %v1192
    %1210 = vmatprep.subr.bf16.mxu0 0
    %1211 = vmatpush1.bf16.msra.mxu0 %v1193
    %1212 = vmatprep.subr.bf16.mxu0 0
    %1213 = vmatpush1.bf16.msra.mxu0 %v1194
    %1214 = vmatprep.subr.bf16.mxu0 0
    %1215 = vmatpush1.bf16.msra.mxu0 %v1195
    %1216 = vmatprep.subr.bf16.mxu0 0
    %1217 = vmatpush1.bf16.msra.mxu0 %v1196
    %1218 = vmatprep.subr.bf16.mxu0 0
    %1219 = vmatpush1.bf16.msra.mxu0 %v1197
    %1220 = vmatprep.subr.bf16.mxu0 0
    %1221 = vmatpush1.bf16.msra.mxu0 %v1198
    %1222 = vmatprep.subr.bf16.mxu0 0
    %1223 = vmatpush1.bf16.msra.mxu0 %v1199
    %1224 = vmatprep.subr.bf16.mxu0 0
    %1225 = vmatpush1.bf16.msra.mxu0 0
    %1226 = vmatprep.subr.bf16.mxu0 0
    %1227 = vmatpush1.bf16.msra.mxu0 0
    %1228 = vmatprep.subr.bf16.mxu0 0
    %1229 = vmatpush1.bf16.msra.mxu0 0
    %1230 = vmatprep.subr.bf16.mxu0 0
    %1231 = vmatpush1.bf16.msra.mxu0 0
    %1232 = vmatprep.subr.bf16.mxu0 0
    %1233 = vmatpush1.bf16.msra.mxu0 0
    %1234 = vmatprep.subr.bf16.mxu0 0
    %1235 = vmatpush1.bf16.msra.mxu0 0
    %1236 = vmatprep.subr.bf16.mxu0 0
    %1237 = vmatpush1.bf16.msra.mxu0 0
    %1238 = vmatprep.subr.bf16.mxu0 0
    %1239 = vmatpush1.bf16.msra.mxu0 0
    %1240 = vmatprep.mubr.bf16.mxu0 0
    %1241 = vmatmul.mubr.bf16.gmra.mrb[0].mxu0 %v977
    %v1242 = vpop.f32.mrb[0].mxu0
    %v1243 = vadd.f32 %v1146, %v1242
    %v1244 = vpop.f32.mrb[0].mxu0
    %v1245 = vpop.f32.mrb[0].mxu0
    %v1246 = vadd.f32 %v1149, %v1245
    %v1247 = vpop.f32.mrb[0].mxu0
    %1248 = vmatprep.mubr.bf16.mxu0 0
    %1249 = vmatmul.mubr.bf16.gmra.mrb[0].mxu0 %v978
    %v1250 = vpop.f32.mrb[0].mxu0
    %v1251 = vadd.f32 %v1154, %v1250
    %v1252 = vpop.f32.mrb[0].mxu0
    %v1253 = vpop.f32.mrb[0].mxu0
    %v1254 = vadd.f32 %v1157, %v1253
    %v1255 = vpop.f32.mrb[0].mxu0
    %1256 = vdwg.mxu0
    %1257 = vmatprep.subr.bf16.mxu0 0
    %1258 = vmatpush1.bf16.msra.mxu0 %v926
    %1259 = vmatprep.subr.bf16.mxu0 0
    %1260 = vmatpush1.bf16.msra.mxu0 %v927
    %1261 = vmatprep.subr.bf16.mxu0 0
    %1262 = vmatpush1.bf16.msra.mxu0 0
    %1263 = vmatprep.subr.bf16.mxu0 0
    %1264 = vmatpush1.bf16.msra.mxu0 0
    %1265 = vmatprep.subr.bf16.mxu0 0
    %1266 = vmatpush1.bf16.msra.mxu0 0
    %1267 = vmatprep.subr.bf16.mxu0 0
    %1268 = vmatpush1.bf16.msra.mxu0 0
    %1269 = vmatprep.subr.bf16.mxu0 0
    %1270 = vmatpush1.bf16.msra.mxu0 0
    %1271 = vmatprep.subr.bf16.mxu0 0
    %1272 = vmatpush1.bf16.msra.mxu0 0
    %1273 = vmatprep.subr.bf16.mxu0 0
    %1274 = vmatpush1.bf16.msra.mxu0 0
    %1275 = vmatprep.subr.bf16.mxu0 0
    %1276 = vmatpush1.bf16.msra.mxu0 0
    %1277 = vmatprep.subr.bf16.mxu0 0
    %1278 = vmatpush1.bf16.msra.mxu0 0
    %1279 = vmatprep.subr.bf16.mxu0 0
    %1280 = vmatpush1.bf16.msra.mxu0 0
    %1281 = vmatprep.subr.bf16.mxu0 0
    %1282 = vmatpush1.bf16.msra.mxu0 0
    %1283 = vmatprep.subr.bf16.mxu0 0
    %1284 = vmatpush1.bf16.msra.mxu0 0
    %1285 = vmatprep.subr.bf16.mxu0 0
    %1286 = vmatpush1.bf16.msra.mxu0 0
    %1287 = vmatprep.subr.bf16.mxu0 0
    %1288 = vmatpush1.bf16.msra.mxu0 0
    %1289 = vmatprep.mubr.bf16.mxu0 0
    %1290 = vmatmul.mubr.bf16.gmra.mrb[0].mxu0 %v525
    %v1291 = vpop.f32.mrb[0].mxu0
    %v1292 = vadd.f32 0.0, %v1291
    %v1293 = vpop.f32.mrb[0].mxu0
    %v1294 = vpop.f32.mrb[0].mxu0
    %v1295 = vadd.f32 0.0, %v1294
    %v1296 = vpop.f32.mrb[0].mxu0
    %1297 = vmatprep.mubr.bf16.mxu0 0
    %1298 = vmatmul.mubr.bf16.gmra.mrb[0].mxu0 %v528
    %v1299 = vpop.f32.mrb[0].mxu0
    %v1300 = vadd.f32 0.0, %v1299
    %v1301 = vpop.f32.mrb[0].mxu0
    %v1302 = vpop.f32.mrb[0].mxu0
    %v1303 = vadd.f32 0.0, %v1302
    %v1304 = vpop.f32.mrb[0].mxu0
    %1305 = vdwg.mxu0
    %v1306 = vpack.c.bf16 %v1295, %v1292
    %v1307 = vpack.c.bf16 %v1303, %v1300
    %s1308 = scalar_lea.vmem [#allocation8], 128
    %v1309 = vld [vmem:[%s1308] sm:$0xf]
    %v1310 = vld [vmem:[%s1308 + $0x4] sm:$0xf]
    %v1311 = vld [vmem:[%s1308 + $0x8] sm:$0xf]
    %v1312 = vld [vmem:[%s1308 + $0xc] sm:$0xf]
    %v1313 = vld [vmem:[%s1308 + $0x10] sm:$0xf]
    %v1314 = vld [vmem:[%s1308 + $0x14] sm:$0xf]
    %v1315 = vld [vmem:[%s1308 + $0x18] sm:$0xf]
    %v1316 = vld [vmem:[%s1308 + $0x1c] sm:$0xf]
    %v1317 = vld [vmem:[%s1308 + $0x20] sm:$0xf]
    %v1318 = vld [vmem:[%s1308 + $0x24] sm:$0xf]
    %v1319 = vld [vmem:[%s1308 + $0x28] sm:$0xf]
    %v1320 = vld [vmem:[%s1308 + $0x2c] sm:$0xf]
    %v1321 = vld [vmem:[%s1308 + $0x30] sm:$0xf]
    %v1322 = vld [vmem:[%s1308 + $0x34] sm:$0xf]
    %v1323 = vld [vmem:[%s1308 + $0x38] sm:$0xf]
    %v1324 = vld [vmem:[%s1308 + $0x3c] sm:$0xf]
    %v1341 = vunpack.c.l.b16 %v1309
    %v1342 = vunpack.c.l.b16 %v1310
    %v1343 = vunpack.c.l.b16 %v1311
    %v1344 = vunpack.c.l.b16 %v1312
    %v1345 = vunpack.c.l.b16 %v1313
    %v1346 = vunpack.c.l.b16 %v1314
    %v1347 = vunpack.c.l.b16 %v1315
    %v1348 = vunpack.c.l.b16 %v1316
    %v1349 = vunpack.c.l.b16 %v1317
    %v1350 = vunpack.c.l.b16 %v1318
    %v1351 = vunpack.c.l.b16 %v1319
    %v1352 = vunpack.c.l.b16 %v1320
    %v1353 = vunpack.c.l.b16 %v1321
    %v1354 = vunpack.c.l.b16 %v1322
    %v1355 = vunpack.c.l.b16 %v1323
    %v1356 = vunpack.c.l.b16 %v1324
    %v1357 = vpack.c.b16 %v1342, %v1341
    %v1358 = vpack.c.b16 %v1344, %v1343
    %v1359 = vpack.c.b16 %v1346, %v1345
    %v1360 = vpack.c.b16 %v1348, %v1347
    %v1361 = vpack.c.b16 %v1350, %v1349
    %v1362 = vpack.c.b16 %v1352, %v1351
    %v1363 = vpack.c.b16 %v1354, %v1353
    %v1364 = vpack.c.b16 %v1356, %v1355
    %1373 = vmatprep.subr.bf16.mxu0 0
    %1374 = vmatpush1.bf16.msra.mxu0 %v1357
    %1375 = vmatprep.subr.bf16.mxu0 0
    %1376 = vmatpush1.bf16.msra.mxu0 %v1358
    %1377 = vmatprep.subr.bf16.mxu0 0
    %1378 = vmatpush1.bf16.msra.mxu0 %v1359
    %1379 = vmatprep.subr.bf16.mxu0 0
    %1380 = vmatpush1.bf16.msra.mxu0 %v1360
    %1381 = vmatprep.subr.bf16.mxu0 0
    %1382 = vmatpush1.bf16.msra.mxu0 %v1361
    %1383 = vmatprep.subr.bf16.mxu0 0
    %1384 = vmatpush1.bf16.msra.mxu0 %v1362
    %1385 = vmatprep.subr.bf16.mxu0 0
    %1386 = vmatpush1.bf16.msra.mxu0 %v1363
    %1387 = vmatprep.subr.bf16.mxu0 0
    %1388 = vmatpush1.bf16.msra.mxu0 %v1364
    %1389 = vmatprep.subr.bf16.mxu0 0
    %1390 = vmatpush1.bf16.msra.mxu0 0
    %1391 = vmatprep.subr.bf16.mxu0 0
    %1392 = vmatpush1.bf16.msra.mxu0 0
    %1393 = vmatprep.subr.bf16.mxu0 0
    %1394 = vmatpush1.bf16.msra.mxu0 0
    %1395 = vmatprep.subr.bf16.mxu0 0
    %1396 = vmatpush1.bf16.msra.mxu0 0
    %1397 = vmatprep.subr.bf16.mxu0 0
    %1398 = vmatpush1.bf16.msra.mxu0 0
    %1399 = vmatprep.subr.bf16.mxu0 0
    %1400 = vmatpush1.bf16.msra.mxu0 0
    %1401 = vmatprep.subr.bf16.mxu0 0
    %1402 = vmatpush1.bf16.msra.mxu0 0
    %1403 = vmatprep.subr.bf16.mxu0 0
    %1404 = vmatpush1.bf16.msra.mxu0 0
    %1405 = vmatprep.mubr.bf16.mxu0 0
    %1406 = vmatmul.mubr.bf16.gmra.mrb[0].mxu0 %v1306
    %v1407 = vpop.f32.mrb[0].mxu0
    %v1408 = vadd.f32 0.0, %v1407
    %v1409 = vpop.f32.mrb[0].mxu0
    %v1410 = vpop.f32.mrb[0].mxu0
    %v1411 = vadd.f32 0.0, %v1410
    %v1412 = vpop.f32.mrb[0].mxu0
    %1413 = vmatprep.mubr.bf16.mxu0 0
    %1414 = vmatmul.mubr.bf16.gmra.mrb[0].mxu0 %v1307
    %v1415 = vpop.f32.mrb[0].mxu0
    %v1416 = vadd.f32 0.0, %v1415
    %v1417 = vpop.f32.mrb[0].mxu0
    %v1418 = vpop.f32.mrb[0].mxu0
    %v1419 = vadd.f32 0.0, %v1418
    %v1420 = vpop.f32.mrb[0].mxu0
    %1421 = vdwg.mxu0
    %v1422 = vadd.f32 %v1243, %v1408
    %v1423 = vadd.f32 %v1246, %v1411
    %v1424 = vadd.f32 %v1251, %v1416
    %v1425 = vadd.f32 %v1254, %v1419
    %v1426 = vld [vmem:[%s7] sm:$0x1]
    %v1427 = vld [vmem:[%s8] sm:$0x1]
    %1428 = vmatprep.subr.mxu0 0.0
    %1429 = vmatpush1.msra.mxu0 %v110
    %1430 = vmatprep.subr.mxu0 0.0
    %1431 = vmatpush1.msra.mxu0 %v111
    %1432 = vmatprep.subr.mxu0 0.0
    %1433 = vmatpush1.msra.mxu0 %v112
    %1434 = vmatprep.subr.mxu0 0.0
    %1435 = vmatpush1.msra.mxu0 %v113
    %1436 = vmatprep.subr.mxu0 0.0
    %1437 = vmatpush1.msra.mxu0 %v114
    %1438 = vmatprep.subr.mxu0 0.0
    %1439 = vmatpush1.msra.mxu0 %v115
    %1440 = vmatprep.subr.mxu0 0.0
    %1441 = vmatpush1.msra.mxu0 %v116
    %1442 = vmatprep.subr.mxu0 0.0
    %1443 = vmatpush1.msra.mxu0 %v117
    %1444 = vmatprep.subr.mxu0 0.0
    %1445 = vmatpush1.msra.mxu0 %v118
    %1446 = vmatprep.subr.mxu0 0.0
    %1447 = vmatpush1.msra.mxu0 %v119
    %1448 = vmatprep.subr.mxu0 0.0
    %1449 = vmatpush1.msra.mxu0 %v120
    %1450 = vmatprep.subr.mxu0 0.0
    %1451 = vmatpush1.msra.mxu0 %v121
    %1452 = vmatprep.subr.mxu0 0.0
    %1453 = vmatpush1.msra.mxu0 %v122
    %1454 = vmatprep.subr.mxu0 0.0
    %1455 = vmatpush1.msra.mxu0 %v123
    %1456 = vmatprep.subr.mxu0 0.0
    %1457 = vmatpush1.msra.mxu0 %v124
    %1458 = vmatprep.subr.mxu0 0.0
    %1459 = vmatpush1.msra.mxu0 %v125
    %1460 = vmatprep.subr.mxu0 0.0
    %1461 = vmatpush1.msra.mxu0 0.0
    %1462 = vmatprep.subr.mxu0 0.0
    %1463 = vmatpush1.msra.mxu0 0.0
    %1464 = vmatprep.subr.mxu0 0.0
    %1465 = vmatpush1.msra.mxu0 0.0
    %1466 = vmatprep.subr.mxu0 0.0
    %1467 = vmatpush1.msra.mxu0 0.0
    %1468 = vmatprep.subr.mxu0 0.0
    %1469 = vmatpush1.msra.mxu0 0.0
    %1470 = vmatprep.subr.mxu0 0.0
    %1471 = vmatpush1.msra.mxu0 0.0
    %1472 = vmatprep.subr.mxu0 0.0
    %1473 = vmatpush1.msra.mxu0 0.0
    %1474 = vmatprep.subr.mxu0 0.0
    %1475 = vmatpush1.msra.mxu0 0.0
    %1476 = vmatprep.subr.mxu0 0.0
    %1477 = vmatpush1.msra.mxu0 0.0
    %1478 = vmatprep.subr.mxu0 0.0
    %1479 = vmatpush1.msra.mxu0 0.0
    %1480 = vmatprep.subr.mxu0 0.0
    %1481 = vmatpush1.msra.mxu0 0.0
    %1482 = vmatprep.subr.mxu0 0.0
    %1483 = vmatpush1.msra.mxu0 0.0
    %1484 = vmatprep.subr.mxu0 0.0
    %1485 = vmatpush1.msra.mxu0 0.0
    %1486 = vmatprep.subr.mxu0 0.0
    %1487 = vmatpush1.msra.mxu0 0.0
    %1488 = vmatprep.subr.mxu0 0.0
    %1489 = vmatpush1.msra.mxu0 0.0
    %1490 = vmatprep.subr.mxu0 0.0
    %1491 = vmatpush1.msra.mxu0 0.0
    %1492 = vmatprep.mubr.f32.mxu0 0.0
    %1493 = vmatmul.mubr.f32.gmra.mrb[0].mxu0 %v1422
    %v1494 = vpop.f32.mrb[0].mxu0
    %v1495 = vadd.f32 0.0, %v1494
    %v1496 = vpop.f32.mrb[0].mxu0
    %1497 = vmatprep.mubr.f32.mxu0 0.0
    %1498 = vmatmul.mubr.f32.gmra.mrb[0].mxu0 %v1423
    %v1499 = vpop.f32.mrb[0].mxu0
    %v1500 = vadd.f32 0.0, %v1499
    %v1501 = vpop.f32.mrb[0].mxu0
    %1502 = vmatprep.mubr.f32.mxu0 0.0
    %1503 = vmatmul.mubr.f32.gmra.mrb[0].mxu0 %v1424
    %v1504 = vpop.f32.mrb[0].mxu0
    %v1505 = vadd.f32 0.0, %v1504
    %v1506 = vpop.f32.mrb[0].mxu0
    %1507 = vmatprep.mubr.f32.mxu0 0.0
    %1508 = vmatmul.mubr.f32.gmra.mrb[0].mxu0 %v1425
    %v1509 = vpop.f32.mrb[0].mxu0
    %v1510 = vadd.f32 0.0, %v1509
    %v1511 = vpop.f32.mrb[0].mxu0
    %1512 = vdwg.mxu0
    %v1513 = vadd.f32 %v1495, %v1500
    %v1514 = vadd.f32 %v1513, %v1505
    %v1515 = vadd.f32 %v1514, %v1510
    %v1516 = vrot.slane %v1515, 4
    %v1517 = vadd.f32 %v1515, %v1516
    %v1518 = vrot.slane %v1517, 2
    %v1519 = vadd.f32 %v1517, %v1518
    %v1520 = vrot.slane %v1519, 1
    %v1521 = vadd.f32 %v1519, %v1520
    %v1522 = vmul.f32 %v1521, 0.001953125
    %v1523 = vsub.f32 %v1422, %v1522
    %v1524 = vsub.f32 %v1423, %v1522
    %v1525 = vsub.f32 %v1424, %v1522
    %v1526 = vsub.f32 %v1425, %v1522
    %v1527 = vmul.f32 %v1523, %v1523
    %v1528 = vmul.f32 %v1524, %v1524
    %v1529 = vmul.f32 %v1525, %v1525
    %v1530 = vmul.f32 %v1526, %v1526
    %1531 = vmatprep.subr.mxu0 0.0
    %1532 = vmatpush1.msra.mxu0 %v110
    %1533 = vmatprep.subr.mxu0 0.0
    %1534 = vmatpush1.msra.mxu0 %v111
    %1535 = vmatprep.subr.mxu0 0.0
    %1536 = vmatpush1.msra.mxu0 %v112
    %1537 = vmatprep.subr.mxu0 0.0
    %1538 = vmatpush1.msra.mxu0 %v113
    %1539 = vmatprep.subr.mxu0 0.0
    %1540 = vmatpush1.msra.mxu0 %v114
    %1541 = vmatprep.subr.mxu0 0.0
    %1542 = vmatpush1.msra.mxu0 %v115
    %1543 = vmatprep.subr.mxu0 0.0
    %1544 = vmatpush1.msra.mxu0 %v116
    %1545 = vmatprep.subr.mxu0 0.0
    %1546 = vmatpush1.msra.mxu0 %v117
    %1547 = vmatprep.subr.mxu0 0.0
    %1548 = vmatpush1.msra.mxu0 %v118
    %1549 = vmatprep.subr.mxu0 0.0
    %1550 = vmatpush1.msra.mxu0 %v119
    %1551 = vmatprep.subr.mxu0 0.0
    %1552 = vmatpush1.msra.mxu0 %v120
    %1553 = vmatprep.subr.mxu0 0.0
    %1554 = vmatpush1.msra.mxu0 %v121
    %1555 = vmatprep.subr.mxu0 0.0
    %1556 = vmatpush1.msra.mxu0 %v122
    %1557 = vmatprep.subr.mxu0 0.0
    %1558 = vmatpush1.msra.mxu0 %v123
    %1559 = vmatprep.subr.mxu0 0.0
    %1560 = vmatpush1.msra.mxu0 %v124
    %1561 = vmatprep.subr.mxu0 0.0
    %1562 = vmatpush1.msra.mxu0 %v125
    %1563 = vmatprep.subr.mxu0 0.0
    %1564 = vmatpush1.msra.mxu0 0.0
    %1565 = vmatprep.subr.mxu0 0.0
    %1566 = vmatpush1.msra.mxu0 0.0
    %1567 = vmatprep.subr.mxu0 0.0
    %1568 = vmatpush1.msra.mxu0 0.0
    %1569 = vmatprep.subr.mxu0 0.0
    %1570 = vmatpush1.msra.mxu0 0.0
    %1571 = vmatprep.subr.mxu0 0.0
    %1572 = vmatpush1.msra.mxu0 0.0
    %1573 = vmatprep.subr.mxu0 0.0
    %1574 = vmatpush1.msra.mxu0 0.0
    %1575 = vmatprep.subr.mxu0 0.0
    %1576 = vmatpush1.msra.mxu0 0.0
    %1577 = vmatprep.subr.mxu0 0.0
    %1578 = vmatpush1.msra.mxu0 0.0
    %1579 = vmatprep.subr.mxu0 0.0
    %1580 = vmatpush1.msra.mxu0 0.0
    %1581 = vmatprep.subr.mxu0 0.0
    %1582 = vmatpush1.msra.mxu0 0.0
    %1583 = vmatprep.subr.mxu0 0.0
    %1584 = vmatpush1.msra.mxu0 0.0
    %1585 = vmatprep.subr.mxu0 0.0
    %1586 = vmatpush1.msra.mxu0 0.0
    %1587 = vmatprep.subr.mxu0 0.0
    %1588 = vmatpush1.msra.mxu0 0.0
    %1589 = vmatprep.subr.mxu0 0.0
    %1590 = vmatpush1.msra.mxu0 0.0
    %1591 = vmatprep.subr.mxu0 0.0
    %1592 = vmatpush1.msra.mxu0 0.0
    %1593 = vmatprep.subr.mxu0 0.0
    %1594 = vmatpush1.msra.mxu0 0.0
    %1595 = vmatprep.mubr.f32.mxu0 0.0
    %1596 = vmatmul.mubr.f32.gmra.mrb[0].mxu0 %v1527
    %v1597 = vpop.f32.mrb[0].mxu0
    %v1598 = vadd.f32 0.0, %v1597
    %v1599 = vpop.f32.mrb[0].mxu0
    %1600 = vmatprep.mubr.f32.mxu0 0.0
    %1601 = vmatmul.mubr.f32.gmra.mrb[0].mxu0 %v1528
    %v1602 = vpop.f32.mrb[0].mxu0
    %v1603 = vadd.f32 0.0, %v1602
    %v1604 = vpop.f32.mrb[0].mxu0
    %1605 = vmatprep.mubr.f32.mxu0 0.0
    %1606 = vmatmul.mubr.f32.gmra.mrb[0].mxu0 %v1529
    %v1607 = vpop.f32.mrb[0].mxu0
    %v1608 = vadd.f32 0.0, %v1607
    %v1609 = vpop.f32.mrb[0].mxu0
    %1610 = vmatprep.mubr.f32.mxu0 0.0
    %1611 = vmatmul.mubr.f32.gmra.mrb[0].mxu0 %v1530
    %v1612 = vpop.f32.mrb[0].mxu0
    %v1613 = vadd.f32 0.0, %v1612
    %v1614 = vpop.f32.mrb[0].mxu0
    %1615 = vdwg.mxu0
    %v1616 = vadd.f32 %v1598, %v1603
    %v1617 = vadd.f32 %v1616, %v1608
    %v1618 = vadd.f32 %v1617, %v1613
    %v1619 = vrot.slane %v1618, 4
    %v1620 = vadd.f32 %v1618, %v1619
    %v1621 = vrot.slane %v1620, 2
    %v1622 = vadd.f32 %v1620, %v1621
    %v1623 = vrot.slane %v1622, 1
    %v1624 = vadd.f32 %v1622, %v1623
    %v1625 = vmul.f32 %v1624, 0.001953125
    %v1626 = vadd.f32 %v1625, 1e-05
    %v1627 = vrsqrt.pop %v1626
    %v1628 = vmul.f32 %v1426, %v1627
    %v1630 = vlaneseq
    %v1631 = vshrl.u32 %v1630, 7
    %v1632 = vsub.s32 0, %v1631
    %v1633 = vrot.slane %v1628, %v1632
    %v1635 = vmul.f32 %v1523, %v1633
    %v1636 = vmul.f32 %v1524, %v1633
    %v1637 = vmul.f32 %v1525, %v1633
    %v1638 = vmul.f32 %v1526, %v1633
    %v1640 = vlaneseq
    %v1641 = vshrl.u32 %v1640, 7
    %v1642 = vsub.s32 0, %v1641
    %v1643 = vrot.slane %v1427, %v1642
    %v1645 = vadd.f32 %v1635, %v1643
    %v1646 = vadd.f32 %v1636, %v1643
    %v1647 = vadd.f32 %v1637, %v1643
    %v1648 = vadd.f32 %v1638, %v1643
    %v1649 = vadd.f32 %v1645, %v106
    %v1650 = vadd.f32 %v1646, %v107
    %v1651 = vadd.f32 %v1647, %v108
    %v1652 = vadd.f32 %v1648, %v109
    %v1653 = vmax.f32 %v1649, 0.0
    %v1654 = vmax.f32 %v1650, 0.0
    %v1655 = vmax.f32 %v1651, 0.0
    %v1656 = vmax.f32 %v1652, 0.0
    %v1657 = vpack.c.bf16 %v1654, %v1653
    %v1658 = vpack.c.bf16 %v1656, %v1655
    %v1661 = vunpack.c.l.b16 %v1657
    %v1662 = vunpack.c.h.b16 %v1657
    %v1663 = vunpack.c.l.b16 %v1658
    %v1664 = vunpack.c.h.b16 %v1658
    %v1665 = vpack.c.b16 %v1661, %v1661
    %v1666 = vpack.c.b16 %v1662, %v1662
    %v1667 = vpack.c.b16 %v1663, %v1663
    %v1668 = vpack.c.b16 %v1664, %v1664
    %1673 = vst [vmem:[#allocation11] sm:$0xf] %v1665
    %1674 = vst [vmem:[#allocation11 + $0x4] sm:$0xf] %v1666
    %1675 = vst [vmem:[#allocation11 + $0x8] sm:$0xf] %v1667
    %1676 = vst [vmem:[#allocation11 + $0xc] sm:$0xf] %v1668
    // Predicated region
    $region58: #{tpu_custom_call.1} parent=1 // pred_check
      _
    $region59: #{tpu_custom_call.1} parent=1 // pred_check_branch
      %1678 = sbr.rel (0) target = $region61
    $region60: #{tpu_custom_call.1} parent=1 // pred_region
      %s1680 = ssub.s32 256, 256
      %1681 = vsyncadd [#allocation4], %s1680
      %s1682 = sshll.u32 [#allocation11], 4
      %s1683 = int_to_ptr.vmem [resolvable:$true] %s1682
      %1688 = dma.vmem_to_hbm [thread:$0]  %s1683, 256, %s9, [#allocation4], 64, 64, 4
    $region61: #{tpu_custom_call.1} parent=1 // pred_fallthru
      _
    // Predicated region
    $region62: #{tpu_custom_call.1} parent=1 // pred_check
      _
    $region63: #{tpu_custom_call.1} parent=1 // pred_check_branch
      %1690 = sbr.rel (0) target = $region65
    $region64: #{tpu_custom_call.1} parent=1 // pred_region
      %1691 = dma.done [#allocation4], 256
    $region65: #{tpu_custom_call.1} parent=1 // pred_fallthru
      _
    %1692 = vsyncpa [#allocation3], 1
    %1693 = vsyncpa [#allocation6], 1
    %1694 = vsyncpa [#allocation9], 1
    %1695 = vsyncpa [#allocation4], 1

</llo_original>
